<compile_context>
chip_gen: v7x
topology: tpu7x:2x2x1
jax: 0.10.0
libtpu: 0.0.40
codegen_flags: <defaults>
</compile_context>

<pallas_src>
import jax
import jax.numpy as jnp
from jax import lax
from jax.experimental import pallas as pl
from jax.experimental.pallas import tpu as pltpu

LANE = 128  # lane width: pad channels to a multiple of this


def _round_up(n, m):
    return (n + m - 1) // m * m


def _pad_axis(a, axis, size):
    pad = size - a.shape[axis]
    if pad == 0:
        return a
    cfg = [(0, 0)] * a.ndim
    cfg[axis] = (0, pad)
    return jnp.pad(a, cfg)


def _pick_row_tile(hout, target):
    """Largest divisor of hout that is <= target (>=1)."""
    t = max(1, min(target, hout))
    while hout % t:
        t -= 1
    return t


def _make_conv3x3_bn_kernel(stride, TR, Wout, apply_relu, fused_sc, has_residual):
    """3x3 conv (pad=1) + BN scale/shift
       [+ fused 1x1-conv+BN shortcut | + identity residual] [+ ReLU]."""

    def kernel(x_ref, w_ref, s_ref, b_ref, *rest):
        if fused_sc:
            xs_ref, wsc_ref, ssc_ref, bsc_ref, o_ref = rest
        elif has_residual:
            res_ref, o_ref = rest
        else:
            (o_ref,) = rest

        Cin = x_ref.shape[-1]
        Cout = o_ref.shape[-1]
        x = x_ref[...]  # (TR_in, Wp, Cin), bf16 row slab with halo

        # 9 shifted-window matmuls on the MXU, f32 accumulation.
        acc = jnp.zeros((TR * Wout, Cout), jnp.float32)
        for kh in range(3):
            for kw in range(3):
                win = x[kh:kh + (TR - 1) * stride + 1:stride,
                        kw:kw + (Wout - 1) * stride + 1:stride, :]
                acc = acc + jnp.dot(win.reshape(TR * Wout, Cin), w_ref[kh, kw],
                                    preferred_element_type=jnp.float32)

        out = acc * s_ref[0][None, :] + b_ref[0][None, :]

        if fused_sc:
            # Fused 1x1-conv + BN shortcut branch (stride already applied by wrapper).
            Csc = xs_ref.shape[-1]
            res = jnp.dot(xs_ref[...].reshape(TR * Wout, Csc), wsc_ref[...],
                          preferred_element_type=jnp.float32)
            out = out + (res * ssc_ref[0][None, :] + bsc_ref[0][None, :])

        out = out.reshape(TR, Wout, Cout)
        if has_residual:
            out = out + res_ref[...].astype(jnp.float32)
        if apply_relu:
            out = jnp.maximum(out, 0.0)
        o_ref[...] = out.astype(o_ref.dtype)

    return kernel


def conv3x3_bn_pallas(x, w, scale, bias, *, stride, apply_relu, out_dtype,
                      row_tile=8, shortcut=None, residual=None):
    """Fused 3x3 conv (pad=1, no bias) + BN(scale,shift), optionally fusing either
    a 1x1-conv+BN shortcut branch or an identity residual, then ReLU.

    x:        (N, H, W, Cin)  NHWC, channels padded to LANE, bf16
    w:        (3, 3, Cin, Cout)  HWIO, bf16
    scale:    (1, Cout) f32 folded BN scale;  bias: (1, Cout) f32 folded BN shift
    shortcut: (xs, wsc, ssc, bsc) with xs: (N, Hout, Wout, Csc) bf16,
              wsc: (Csc, Cout) bf16, ssc/bsc: (1, Cout) f32
    residual: (N, Hout, Wout, Cout) bf16 identity branch
    """
    N, H, W, Cin = x.shape
    Cout = w.shape[-1]
    Hout = (H - 1) // stride + 1
    Wout = (W - 1) // stride + 1
    TR = _pick_row_tile(Hout, row_tile)      # output rows per grid step
    NB = Hout // TR
    TR_in = (TR - 1) * stride + 3            # input rows incl. halo
    Wp = W + 2

    # Pad H/W by 1 and pre-split rows into blocks carrying their own halo rows.
    xp = jnp.pad(x, ((0, 0), (1, 1), (1, 1), (0, 0)))
    xblk = jnp.stack(
        [xp[:, i * TR * stride: i * TR * stride + TR_in] for i in range(NB)], axis=1)
    # xblk: (N, NB, TR_in, Wp, Cin)

    in_specs = [
        pl.BlockSpec((None, None, TR_in, Wp, Cin), lambda n, i: (n, i, 0, 0, 0)),
        pl.BlockSpec((3, 3, Cin, Cout), lambda n, i: (0, 0, 0, 0)),
        pl.BlockSpec((1, Cout), lambda n, i: (0, 0)),
        pl.BlockSpec((1, Cout), lambda n, i: (0, 0)),
    ]
    args = [xblk, w, scale, bias]

    fused_sc = shortcut is not None
    has_residual = residual is not None
    if fused_sc:
        xs, wsc, ssc, bsc = shortcut
        Csc = xs.shape[-1]
        xsb = xs.reshape(N, NB, TR, Wout, Csc)
        in_specs += [
            pl.BlockSpec((None, None, TR, Wout, Csc), lambda n, i: (n, i, 0, 0, 0)),
            pl.BlockSpec((Csc, Cout), lambda n, i: (0, 0)),
            pl.BlockSpec((1, Cout), lambda n, i: (0, 0)),
            pl.BlockSpec((1, Cout), lambda n, i: (0, 0)),
        ]
        args += [xsb, wsc, ssc, bsc]
    elif has_residual:
        rb = residual.reshape(N, NB, TR, Wout, Cout)
        in_specs.append(
            pl.BlockSpec((None, None, TR, Wout, Cout), lambda n, i: (n, i, 0, 0, 0)))
        args.append(rb)

    kernel = _make_conv3x3_bn_kernel(stride, TR, Wout, apply_relu, fused_sc,
                                     has_residual)

    out = pl.pallas_call(
        kernel,
        out_shape=jax.ShapeDtypeStruct((N, NB, TR, Wout, Cout), out_dtype),
        grid=(N, NB),
        in_specs=in_specs,
        out_specs=pl.BlockSpec((None, None, TR, Wout, Cout),
                               lambda n, i: (n, i, 0, 0, 0)),
        compiler_params=pltpu.CompilerParams(
            dimension_semantics=("parallel", "parallel"),
            vmem_limit_bytes=48 * 1024 * 1024,
        ),
    )(*args)
    return out.reshape(N, Hout, Wout, Cout)


def _fold_bn(gamma, beta, mean, var, eps=1e-3):   # eps=0.001 matches the module
    scale = gamma / jnp.sqrt(var + eps)
    return scale, beta - mean * scale


class BasicBlockPallas:
    """JAX/Pallas re-implementation of the PyTorch BasicBlock forward pass."""

    expansion = 1

    def __init__(self, in_planes, planes, stride=1, *, key, row_tile=8):
        self.stride = stride
        self.in_planes = in_planes
        self.planes = planes
        self.row_tile = row_tile
        out_planes = self.expansion * planes
        self.out_planes = out_planes
        self.has_shortcut = (stride != 1) or (in_planes != out_planes)

        self.cin_p = _round_up(in_planes, LANE)
        self.cmid_p = _round_up(planes, LANE)
        self.cout_p = _round_up(out_planes, LANE)

        ks = list(jax.random.split(key, 12))

        def nrm(k, shape, s=0.1):
            return s * jax.random.normal(k, shape, jnp.float32)

        # Conv weights in HWIO layout (f32 masters; bf16/padded copies for kernels).
        self.w1 = nrm(ks[0], (3, 3, in_planes, planes))
        self.w2 = nrm(ks[1], (3, 3, planes, out_planes))
        self.s1, self.b1 = _fold_bn(
            1.0 + nrm(ks[2], (planes,)), nrm(ks[3], (planes,)),
            nrm(ks[4], (planes,)), 1.0 + 0.1 * jax.random.uniform(ks[5], (planes,)))
        self.s2, self.b2 = _fold_bn(
            1.0 + nrm(ks[6], (out_planes,)), nrm(ks[7], (out_planes,)),
            nrm(ks[8], (out_planes,)),
            1.0 + 0.1 * jax.random.uniform(ks[9], (out_planes,)))
        if self.has_shortcut:
            self.wsc = nrm(ks[10], (1, 1, in_planes, out_planes))
            ksc = jax.random.split(ks[11], 4)
            self.ssc, self.bsc = _fold_bn(
                1.0 + nrm(ksc[0], (out_planes,)), nrm(ksc[1], (out_planes,)),
                nrm(ksc[2], (out_planes,)),
                1.0 + 0.1 * jax.random.uniform(ksc[3], (out_planes,)))

        # Kernel-side parameters: channel-padded, bf16 weights, f32 BN scale/shift.
        def pad_w(w, ci, co):
            return _pad_axis(_pad_axis(w.astype(jnp.bfloat16), -2, ci), -1, co)

        def pad_v(v, c):
            return _pad_axis(v, -1, c).reshape(1, c)

        self.w1_p = pad_w(self.w1, self.cin_p, self.cmid_p)
        self.w2_p = pad_w(self.w2, self.cmid_p, self.cout_p)
        self.s1_p, self.b1_p = pad_v(self.s1, self.cmid_p), pad_v(self.b1, self.cmid_p)
        self.s2_p, self.b2_p = pad_v(self.s2, self.cout_p), pad_v(self.b2, self.cout_p)
        if self.has_shortcut:
            self.wsc_p = pad_w(self.wsc, self.cin_p, self.cout_p).reshape(
                self.cin_p, self.cout_p)
            self.ssc_p = pad_v(self.ssc, self.cout_p)
            self.bsc_p = pad_v(self.bsc, self.cout_p)

    def __call__(self, x_nchw):
        # NOTE: a full backbone should stay NHWC end-to-end and transpose only at
        # the model boundary; done per-block here because this module is standalone.
        x = jnp.transpose(x_nchw, (0, 2, 3, 1))            # NCHW -> NHWC
        xb = _pad_axis(x, -1, self.cin_p).astype(jnp.bfloat16)

        # conv1 + bn1 + relu1 (intermediate activations kept in bf16).
        y = conv3x3_bn_pallas(
            xb, self.w1_p, self.s1_p, self.b1_p,
            stride=self.stride, apply_relu=True, out_dtype=jnp.bfloat16,
            row_tile=self.row_tile)

        # conv2 + bn2 + (fused 1x1-conv+BN shortcut | identity residual) + relu2.
        if self.has_shortcut:
            xs = xb[:, ::self.stride, ::self.stride, :]    # 1x1 conv w/ stride == subsample
            out = conv3x3_bn_pallas(
                y, self.w2_p, self.s2_p, self.b2_p,
                stride=1, apply_relu=True, out_dtype=x.dtype,
                row_tile=self.row_tile,
                shortcut=(xs, self.wsc_p, self.ssc_p, self.bsc_p))
        else:
            out = conv3x3_bn_pallas(
                y, self.w2_p, self.s2_p, self.b2_p,
                stride=1, apply_relu=True, out_dtype=x.dtype,
                row_tile=self.row_tile, residual=xb)

        out = out[..., :self.out_planes]                   # drop channel padding
        return jnp.transpose(out, (0, 3, 1, 2))            # NHWC -> NCHW

    # Pure-JAX reference (lax.conv) mirroring the kernel's bf16 quantization points.
    def reference(self, x_nchw):
        dn = ("NHWC", "HWIO", "NHWC")
        bf16, f32 = jnp.bfloat16, jnp.float32
        x = jnp.transpose(x_nchw, (0, 2, 3, 1))
        xb = x.astype(bf16)
        y = lax.conv_general_dilated(
            xb, self.w1.astype(bf16), (self.stride, self.stride), ((1, 1), (1, 1)),
            dimension_numbers=dn, preferred_element_type=f32)
        y = jnp.maximum(y * self.s1 + self.b1, 0.0).astype(bf16)
        y2 = lax.conv_general_dilated(
            y, self.w2.astype(bf16), (1, 1), ((1, 1), (1, 1)),
            dimension_numbers=dn, preferred_element_type=f32)
        y2 = y2 * self.s2 + self.b2
        if self.has_shortcut:
            sc = lax.conv_general_dilated(
                xb, self.wsc.astype(bf16), (self.stride, self.stride),
                ((0, 0), (0, 0)), dimension_numbers=dn, preferred_element_type=f32)
            sc = sc * self.ssc + self.bsc
        else:
            sc = xb.astype(f32)
        out = jnp.maximum(y2 + sc, 0.0).astype(x.dtype)
        return jnp.transpose(out, (0, 3, 1, 2))


if __name__ == "__main__":
    key = jax.random.PRNGKey(0)
    k1, k2, kx1, kx2 = jax.random.split(key, 4)

    N, H, W = 2, 16, 16

    # Case 1: in_planes != planes -> exercises the fused 1x1-conv+BN shortcut.
    C_in, planes = 4, 8
    block = BasicBlockPallas(C_in, planes, stride=1, key=k1, row_tile=8)
    x = jax.random.normal(kx1, (N, C_in, H, W), jnp.float32)
    out = jax.block_until_ready(block(x))
    ref = jax.block_until_ready(block.reference(x))
    assert out.shape == ref.shape == (N, planes, H, W), out.shape
    assert jnp.allclose(out, ref, rtol=1e-2, atol=1e-2), float(
        jnp.max(jnp.abs(out - ref)))

    # Case 2: in_planes == planes, stride=1 -> identity-shortcut path.
    block2 = BasicBlockPallas(planes, planes, stride=1, key=k2, row_tile=8)
    x2 = jax.random.normal(kx2, (N, planes, H, W), jnp.float32)
    out2 = jax.block_until_ready(block2(x2))
    ref2 = jax.block_until_ready(block2.reference(x2))
    assert out2.shape == ref2.shape == (N, planes, H, W), out2.shape
    assert jnp.allclose(out2, ref2, rtol=1e-2, atol=1e-2), float(
        jnp.max(jnp.abs(out2 - ref2)))

    print("KERNEL_OK")
</pallas_src>

<mosaic_0001>
module attributes {stable_mosaic.version = 11 : i64} {
  func.func @kernel(%arg0: i32, %arg1: i32, %arg2: memref<1x1x10x18x128xbf16, #tpu.memory_space<vmem>>, %arg3: memref<3x3x128x128xbf16, #tpu.memory_space<vmem>>, %arg4: memref<1x128xf32, #tpu.memory_space<vmem>>, %arg5: memref<1x128xf32, #tpu.memory_space<vmem>>, %arg6: memref<1x1x8x16x128xbf16, #tpu.memory_space<vmem>>) attributes {dimension_semantics = [#tpu.dimension_semantics<parallel>, #tpu.dimension_semantics<parallel>], iteration_bounds = array<i64: 2, 2>, scalar_prefetch = 0 : i64, scratch_operands = 0 : i64, tpu.core_type = #tpu.core_type<tc>, window_params = [{transform_indices = @transform_0, window_bounds = array<i64: 1, 1, 10, 18, 128>}, {pipeline_mode = #tpu.pipeline_mode<synchronous>, transform_indices = @transform_1, window_bounds = array<i64: 3, 3, 128, 128>}, {pipeline_mode = #tpu.pipeline_mode<synchronous>, transform_indices = @transform_2, window_bounds = array<i64: 1, 128>}, {pipeline_mode = #tpu.pipeline_mode<synchronous>, transform_indices = @transform_3, window_bounds = array<i64: 1, 128>}, {transform_indices = @transform_4, window_bounds = array<i64: 1, 1, 8, 16, 128>}]} {
    %c0 = arith.constant 0 : index
    %c0_0 = arith.constant 0 : index
    %c0_1 = arith.constant 0 : index
    %c0_2 = arith.constant 0 : index
    %c0_3 = arith.constant 0 : index
    %0 = vector.load %arg2[%c0, %c0_0, %c0_1, %c0_2, %c0_3] : memref<1x1x10x18x128xbf16, #tpu.memory_space<vmem>>, vector<1x1x10x18x128xbf16>
    %1 = vector.shape_cast %0 : vector<1x1x10x18x128xbf16> to vector<10x18x128xbf16>
    %cst = arith.constant 0.000000e+00 : f32
    %2 = vector.broadcast %cst : f32 to vector<128x128xf32>
    %3 = vector.extract_strided_slice %1 {offsets = [0, 0, 0], sizes = [8, 16, 128], strides = [1, 1, 1]} : vector<10x18x128xbf16> to vector<8x16x128xbf16>
    %4 = vector.shape_cast %3 : vector<8x16x128xbf16> to vector<128x128xbf16>
    %c0_4 = arith.constant 0 : index
    %c0_5 = arith.constant 0 : index
    %c0_6 = arith.constant 0 : index
    %c0_7 = arith.constant 0 : index
    %5 = vector.load %arg3[%c0_4, %c0_5, %c0_6, %c0_7] : memref<3x3x128x128xbf16, #tpu.memory_space<vmem>>, vector<1x1x128x128xbf16>
    %6 = vector.shape_cast %5 : vector<1x1x128x128xbf16> to vector<128x128xbf16>
    %cst_8 = arith.constant dense<0.000000e+00> : vector<128x128xf32>
    %7 = tpu.matmul %4, %6, %cst_8 {dimension_numbers = #tpu.dot_dimension_numbers<[1], [0], [0], [1], [0, 0, 1, 1], [], []>} : vector<128x128xbf16>, vector<128x128xbf16>, vector<128x128xf32> -> vector<128x128xf32>
    %8 = arith.addf %2, %7 : vector<128x128xf32>
    %9 = vector.extract_strided_slice %1 {offsets = [0, 1, 0], sizes = [8, 16, 128], strides = [1, 1, 1]} : vector<10x18x128xbf16> to vector<8x16x128xbf16>
    %10 = vector.shape_cast %9 : vector<8x16x128xbf16> to vector<128x128xbf16>
    %c0_9 = arith.constant 0 : index
    %c1 = arith.constant 1 : index
    %c0_10 = arith.constant 0 : index
    %c0_11 = arith.constant 0 : index
    %11 = vector.load %arg3[%c0_9, %c1, %c0_10, %c0_11] : memref<3x3x128x128xbf16, #tpu.memory_space<vmem>>, vector<1x1x128x128xbf16>
    %12 = vector.shape_cast %11 : vector<1x1x128x128xbf16> to vector<128x128xbf16>
    %cst_12 = arith.constant dense<0.000000e+00> : vector<128x128xf32>
    %13 = tpu.matmul %10, %12, %cst_12 {dimension_numbers = #tpu.dot_dimension_numbers<[1], [0], [0], [1], [0, 0, 1, 1], [], []>} : vector<128x128xbf16>, vector<128x128xbf16>, vector<128x128xf32> -> vector<128x128xf32>
    %14 = arith.addf %8, %13 : vector<128x128xf32>
    %15 = vector.extract_strided_slice %1 {offsets = [0, 2, 0], sizes = [8, 16, 128], strides = [1, 1, 1]} : vector<10x18x128xbf16> to vector<8x16x128xbf16>
    %16 = vector.shape_cast %15 : vector<8x16x128xbf16> to vector<128x128xbf16>
    %c0_13 = arith.constant 0 : index
    %c2 = arith.constant 2 : index
    %c0_14 = arith.constant 0 : index
    %c0_15 = arith.constant 0 : index
    %17 = vector.load %arg3[%c0_13, %c2, %c0_14, %c0_15] : memref<3x3x128x128xbf16, #tpu.memory_space<vmem>>, vector<1x1x128x128xbf16>
    %18 = vector.shape_cast %17 : vector<1x1x128x128xbf16> to vector<128x128xbf16>
    %cst_16 = arith.constant dense<0.000000e+00> : vector<128x128xf32>
    %19 = tpu.matmul %16, %18, %cst_16 {dimension_numbers = #tpu.dot_dimension_numbers<[1], [0], [0], [1], [0, 0, 1, 1], [], []>} : vector<128x128xbf16>, vector<128x128xbf16>, vector<128x128xf32> -> vector<128x128xf32>
    %20 = arith.addf %14, %19 : vector<128x128xf32>
    %21 = vector.extract_strided_slice %1 {offsets = [1, 0, 0], sizes = [8, 16, 128], strides = [1, 1, 1]} : vector<10x18x128xbf16> to vector<8x16x128xbf16>
    %22 = vector.shape_cast %21 : vector<8x16x128xbf16> to vector<128x128xbf16>
    %c1_17 = arith.constant 1 : index
    %c0_18 = arith.constant 0 : index
    %c0_19 = arith.constant 0 : index
    %c0_20 = arith.constant 0 : index
    %23 = vector.load %arg3[%c1_17, %c0_18, %c0_19, %c0_20] : memref<3x3x128x128xbf16, #tpu.memory_space<vmem>>, vector<1x1x128x128xbf16>
    %24 = vector.shape_cast %23 : vector<1x1x128x128xbf16> to vector<128x128xbf16>
    %cst_21 = arith.constant dense<0.000000e+00> : vector<128x128xf32>
    %25 = tpu.matmul %22, %24, %cst_21 {dimension_numbers = #tpu.dot_dimension_numbers<[1], [0], [0], [1], [0, 0, 1, 1], [], []>} : vector<128x128xbf16>, vector<128x128xbf16>, vector<128x128xf32> -> vector<128x128xf32>
    %26 = arith.addf %20, %25 : vector<128x128xf32>
    %27 = vector.extract_strided_slice %1 {offsets = [1, 1, 0], sizes = [8, 16, 128], strides = [1, 1, 1]} : vector<10x18x128xbf16> to vector<8x16x128xbf16>
    %28 = vector.shape_cast %27 : vector<8x16x128xbf16> to vector<128x128xbf16>
    %c1_22 = arith.constant 1 : index
    %c1_23 = arith.constant 1 : index
    %c0_24 = arith.constant 0 : index
    %c0_25 = arith.constant 0 : index
    %29 = vector.load %arg3[%c1_22, %c1_23, %c0_24, %c0_25] : memref<3x3x128x128xbf16, #tpu.memory_space<vmem>>, vector<1x1x128x128xbf16>
    %30 = vector.shape_cast %29 : vector<1x1x128x128xbf16> to vector<128x128xbf16>
    %cst_26 = arith.constant dense<0.000000e+00> : vector<128x128xf32>
    %31 = tpu.matmul %28, %30, %cst_26 {dimension_numbers = #tpu.dot_dimension_numbers<[1], [0], [0], [1], [0, 0, 1, 1], [], []>} : vector<128x128xbf16>, vector<128x128xbf16>, vector<128x128xf32> -> vector<128x128xf32>
    %32 = arith.addf %26, %31 : vector<128x128xf32>
    %33 = vector.extract_strided_slice %1 {offsets = [1, 2, 0], sizes = [8, 16, 128], strides = [1, 1, 1]} : vector<10x18x128xbf16> to vector<8x16x128xbf16>
    %34 = vector.shape_cast %33 : vector<8x16x128xbf16> to vector<128x128xbf16>
    %c1_27 = arith.constant 1 : index
    %c2_28 = arith.constant 2 : index
    %c0_29 = arith.constant 0 : index
    %c0_30 = arith.constant 0 : index
    %35 = vector.load %arg3[%c1_27, %c2_28, %c0_29, %c0_30] : memref<3x3x128x128xbf16, #tpu.memory_space<vmem>>, vector<1x1x128x128xbf16>
    %36 = vector.shape_cast %35 : vector<1x1x128x128xbf16> to vector<128x128xbf16>
    %cst_31 = arith.constant dense<0.000000e+00> : vector<128x128xf32>
    %37 = tpu.matmul %34, %36, %cst_31 {dimension_numbers = #tpu.dot_dimension_numbers<[1], [0], [0], [1], [0, 0, 1, 1], [], []>} : vector<128x128xbf16>, vector<128x128xbf16>, vector<128x128xf32> -> vector<128x128xf32>
    %38 = arith.addf %32, %37 : vector<128x128xf32>
    %39 = vector.extract_strided_slice %1 {offsets = [2, 0, 0], sizes = [8, 16, 128], strides = [1, 1, 1]} : vector<10x18x128xbf16> to vector<8x16x128xbf16>
    %40 = vector.shape_cast %39 : vector<8x16x128xbf16> to vector<128x128xbf16>
    %c2_32 = arith.constant 2 : index
    %c0_33 = arith.constant 0 : index
    %c0_34 = arith.constant 0 : index
    %c0_35 = arith.constant 0 : index
    %41 = vector.load %arg3[%c2_32, %c0_33, %c0_34, %c0_35] : memref<3x3x128x128xbf16, #tpu.memory_space<vmem>>, vector<1x1x128x128xbf16>
    %42 = vector.shape_cast %41 : vector<1x1x128x128xbf16> to vector<128x128xbf16>
    %cst_36 = arith.constant dense<0.000000e+00> : vector<128x128xf32>
    %43 = tpu.matmul %40, %42, %cst_36 {dimension_numbers = #tpu.dot_dimension_numbers<[1], [0], [0], [1], [0, 0, 1, 1], [], []>} : vector<128x128xbf16>, vector<128x128xbf16>, vector<128x128xf32> -> vector<128x128xf32>
    %44 = arith.addf %38, %43 : vector<128x128xf32>
    %45 = vector.extract_strided_slice %1 {offsets = [2, 1, 0], sizes = [8, 16, 128], strides = [1, 1, 1]} : vector<10x18x128xbf16> to vector<8x16x128xbf16>
    %46 = vector.shape_cast %45 : vector<8x16x128xbf16> to vector<128x128xbf16>
    %c2_37 = arith.constant 2 : index
    %c1_38 = arith.constant 1 : index
    %c0_39 = arith.constant 0 : index
    %c0_40 = arith.constant 0 : index
    %47 = vector.load %arg3[%c2_37, %c1_38, %c0_39, %c0_40] : memref<3x3x128x128xbf16, #tpu.memory_space<vmem>>, vector<1x1x128x128xbf16>
    %48 = vector.shape_cast %47 : vector<1x1x128x128xbf16> to vector<128x128xbf16>
    %cst_41 = arith.constant dense<0.000000e+00> : vector<128x128xf32>
    %49 = tpu.matmul %46, %48, %cst_41 {dimension_numbers = #tpu.dot_dimension_numbers<[1], [0], [0], [1], [0, 0, 1, 1], [], []>} : vector<128x128xbf16>, vector<128x128xbf16>, vector<128x128xf32> -> vector<128x128xf32>
    %50 = arith.addf %44, %49 : vector<128x128xf32>
    %51 = vector.extract_strided_slice %1 {offsets = [2, 2, 0], sizes = [8, 16, 128], strides = [1, 1, 1]} : vector<10x18x128xbf16> to vector<8x16x128xbf16>
    %52 = vector.shape_cast %51 : vector<8x16x128xbf16> to vector<128x128xbf16>
    %c2_42 = arith.constant 2 : index
    %c2_43 = arith.constant 2 : index
    %c0_44 = arith.constant 0 : index
    %c0_45 = arith.constant 0 : index
    %53 = vector.load %arg3[%c2_42, %c2_43, %c0_44, %c0_45] : memref<3x3x128x128xbf16, #tpu.memory_space<vmem>>, vector<1x1x128x128xbf16>
    %54 = vector.shape_cast %53 : vector<1x1x128x128xbf16> to vector<128x128xbf16>
    %cst_46 = arith.constant dense<0.000000e+00> : vector<128x128xf32>
    %55 = tpu.matmul %52, %54, %cst_46 {dimension_numbers = #tpu.dot_dimension_numbers<[1], [0], [0], [1], [0, 0, 1, 1], [], []>} : vector<128x128xbf16>, vector<128x128xbf16>, vector<128x128xf32> -> vector<128x128xf32>
    %56 = arith.addf %50, %55 : vector<128x128xf32>
    %c0_47 = arith.constant 0 : index
    %c0_48 = arith.constant 0 : index
    %57 = vector.load %arg4[%c0_47, %c0_48] : memref<1x128xf32, #tpu.memory_space<vmem>>, vector<1x128xf32>
    %58 = vector.shape_cast %57 : vector<1x128xf32> to vector<128xf32>
    %59 = vector.shape_cast %58 : vector<128xf32> to vector<1x128xf32>
    %60 = vector.broadcast %59 : vector<1x128xf32> to vector<128x128xf32>
    %61 = arith.mulf %56, %60 : vector<128x128xf32>
    %c0_49 = arith.constant 0 : index
    %c0_50 = arith.constant 0 : index
    %62 = vector.load %arg5[%c0_49, %c0_50] : memref<1x128xf32, #tpu.memory_space<vmem>>, vector<1x128xf32>
    %63 = vector.shape_cast %62 : vector<1x128xf32> to vector<128xf32>
    %64 = vector.shape_cast %63 : vector<128xf32> to vector<1x128xf32>
    %65 = vector.broadcast %64 : vector<1x128xf32> to vector<128x128xf32>
    %66 = arith.addf %61, %65 : vector<128x128xf32>
    %67 = vector.shape_cast %66 : vector<128x128xf32> to vector<8x16x128xf32>
    %cst_51 = arith.constant 0.000000e+00 : f32
    %68 = vector.broadcast %cst_51 : f32 to vector<8x16x128xf32>
    %69 = arith.maximumf %67, %68 : vector<8x16x128xf32>
    %70 = arith.truncf %69 : vector<8x16x128xf32> to vector<8x16x128xbf16>
    %c0_52 = arith.constant 0 : index
    %c0_53 = arith.constant 0 : index
    %c0_54 = arith.constant 0 : index
    %c0_55 = arith.constant 0 : index
    %c0_56 = arith.constant 0 : index
    %71 = vector.load %arg6[%c0_52, %c0_53, %c0_54, %c0_55, %c0_56] : memref<1x1x8x16x128xbf16, #tpu.memory_space<vmem>>, vector<1x1x8x16x128xbf16>
    %72 = vector.shape_cast %71 : vector<1x1x8x16x128xbf16> to vector<8x16x128xbf16>
    %73 = vector.shape_cast %70 : vector<8x16x128xbf16> to vector<1x1x8x16x128xbf16>
    tpu.vector_store %arg6[%c0_52, %c0_53, %c0_54, %c0_55, %c0_56], %73 {strides = array<i32>} : memref<1x1x8x16x128xbf16, #tpu.memory_space<vmem>>, vector<1x1x8x16x128xbf16>,
    return
  }
  func.func @transform_0(%arg0: i32, %arg1: i32) -> (i32, i32, i32, i32, i32) {
    %c0_i32 = arith.constant 0 : i32
    %c0_i32_0 = arith.constant 0 : i32
    %c0_i32_1 = arith.constant 0 : i32
    %c0_i32_2 = arith.constant 0 : i32
    return %arg0, %arg1, %c0_i32, %c0_i32_0, %c0_i32_1 : i32, i32, i32, i32, i32
  }
  func.func @transform_1(%arg0: i32, %arg1: i32) -> (i32, i32, i32, i32) {
    %c0_i32 = arith.constant 0 : i32
    %c0_i32_0 = arith.constant 0 : i32
    %c0_i32_1 = arith.constant 0 : i32
    %c0_i32_2 = arith.constant 0 : i32
    %c0_i32_3 = arith.constant 0 : i32
    return %c0_i32, %c0_i32_0, %c0_i32_1, %c0_i32_2 : i32, i32, i32, i32
  }
  func.func @transform_2(%arg0: i32, %arg1: i32) -> (i32, i32) {
    %c0_i32 = arith.constant 0 : i32
    %c0_i32_0 = arith.constant 0 : i32
    %c0_i32_1 = arith.constant 0 : i32
    return %c0_i32, %c0_i32_0 : i32, i32
  }
  func.func @transform_3(%arg0: i32, %arg1: i32) -> (i32, i32) {
    %c0_i32 = arith.constant 0 : i32
    %c0_i32_0 = arith.constant 0 : i32
    %c0_i32_1 = arith.constant 0 : i32
    return %c0_i32, %c0_i32_0 : i32, i32
  }
  func.func @transform_4(%arg0: i32, %arg1: i32) -> (i32, i32, i32, i32, i32) {
    %c0_i32 = arith.constant 0 : i32
    %c0_i32_0 = arith.constant 0 : i32
    %c0_i32_1 = arith.constant 0 : i32
    %c0_i32_2 = arith.constant 0 : i32
    return %arg0, %arg1, %c0_i32, %c0_i32_0, %c0_i32_1 : i32, i32, i32, i32, i32
  }
}

</mosaic_0001>

<llo_original>
// kernel: tpu_custom_call.1
$region0: #{tpu_custom_call.1}
  #allocation0 [shape = 'u32[]', space=smem, size = 0x4, offset = 0x4, fixed_abs, tag = 'smem constant byte address 0x4 - core index']
  #allocation1 [shape = 'u32[144,128]{1,0:T(1,128)}', space=vmem, size = 0x12000, scoped, tag = 'internal scratch']
  %s0 = inlined_call_operand.vmem [shape: bf16[2,2,10,18,128], index: 0, kind: input, shape index: {}]
  %s1 = inlined_call_operand.vmem [shape: bf16[3,3,128,128], index: 1, kind: input, shape index: {}]
  %s2 = inlined_call_operand.vmem [shape: f32[1,128], index: 2, kind: input, shape index: {}]
  %s3 = inlined_call_operand.vmem [shape: f32[1,128], index: 3, kind: input, shape index: {}]
  %s4 = inlined_call_operand.hbm [shape: bf16[2,2,8,16,128], index: 4, kind: output, shape index: {}]
  %s5 = sld [smem:[#allocation0]]
  $region49: #{tpu_custom_call.1} parent=0
    _
  %s7 = ssub.s32 1, %s5
  %s8 = scalar_select 0, %s7, %s5
  $region1: #{tpu_custom_call.1} parent=0
    #allocation2 [shape = 'u8[65536]{0}', space=vmem, size = 0x10000, scoped, tag = 'output window, operand 0']
    #allocation3 [shape = 's32[2]{0}', space=sflag, size = 0x8, scoped, tag = 'scoped memory for tpu_custom_call.1']
    %9 = vsyncpa [#allocation3], 0
    %s10 = scalar_lea.sflag [#allocation3], 1
    %11 = vsyncpa %s10, 0
    loop: start=0, step=1, limit=6
    $region2: #{tpu_custom_call.1} parent=1 // loop_pre_header
      _
    $region3: #{tpu_custom_call.1} parent=1 // loop_header
      %s13 = sphi 0, %s17
      %p14 = scmp.ge.s32.totalorder %s13, 6
      %s20 = sphi 0, %s32
      %s21 = sphi 0, %s28
      %s22 = sphi 0, %s20
      %s23 = sphi 0, %s21
      %s24 = sphi 0, %s22
      %s25 = sphi 0, %s23
      %s37 = sphi 0, %s39
      %s40 = sphi 0, %s37
      %s41 = sphi 0, %s40
      %s57 = sphi 0, %s41
      %s61 = sphi 0, %s61
      %s63 = sphi 0, %s61
      %s64 = sphi 0, %s63
      %s78 = sphi 0, %s64
      %s82 = sphi 0, %s82
      %s84 = sphi 0, %s82
      %s85 = sphi 0, %s84
      %s99 = sphi 0, %s85
      %s103 = sphi 0, %s103
      %s105 = sphi 0, %s103
      %s106 = sphi 0, %s105
      %s120 = sphi 0, %s106
      %s128 = sphi 0, %s130
      %s131 = sphi 0, %s128
      %s132 = sphi 0, %s131
      %s148 = sphi 0, %s132
    $region4: #{tpu_custom_call.1} parent=1 // loop_header_branch
      %16 = sbr.rel (%p14) target = $region8
    $region5: #{tpu_custom_call.1} parent=1 // loop_body
      %s18 = ssub.s32 %s13, 1
      %s19 = ssub.s32 %s13, 2
      %s26 = sadd.s32 1, %s21
      %p27 = scmp.ge.s32.totalorder %s26, 2
      %s28 = scalar_select %p27, 0, %s26
      %s29 = sadd.s32 1, %s20
      %s30 = scalar_select %p27, %s29, %s20
      %p31 = scmp.ge.s32.totalorder %s30, 2
      %s32 = scalar_select %p31, 0, %s30
      %s33 = ssub.s32 %s20, %s32
      %s34 = ssub.s32 %s21, %s28
      %s35 = sor.u32 %s33, %s34
      %p36 = scmp.eq.s32.totalorder %s35, 0
      %s38 = sadd.s32 %s37, 1
      %s39 = scalar_select %p36, %s37, %s38
      %p42 = pneg %p36
      %p43 = scmp.eq.s32.totalorder %s13, 3
      %p44 = por %p42, %p43
      %p45 = scmp.ne.s32.totalorder %s37, %s40
      %p46 = scmp.eq.s32.totalorder %s13, 0
      %p47 = por %p45, %p46
      %p48 = scmp.ne.s32.totalorder %s37, %s40
      %p49 = scmp.eq.s32.totalorder %s18, 3
      %p50 = por %p48, %p49
      %p51 = scmp.ne.s32.totalorder %s40, %s41
      %p52 = scmp.eq.s32.totalorder %s18, 0
      %p53 = por %p51, %p52
      %p54 = scmp.ne.s32.totalorder %s40, %s41
      %p55 = scmp.eq.s32.totalorder %s19, 3
      %p56 = por %p54, %p55
      %p58 = scmp.ne.s32.totalorder %s41, %s57
      %p59 = scmp.eq.s32.totalorder %s19, 0
      %p60 = por %p58, %p59
      %s62 = sadd.s32 %s61, 1
      %p65 = scmp.eq.s32.totalorder %s13, 3
      %p66 = scmp.ne.s32.totalorder %s61, %s63
      %p67 = scmp.eq.s32.totalorder %s13, 0
      %p68 = por %p66, %p67
      %p69 = scmp.ne.s32.totalorder %s61, %s63
      %p70 = scmp.eq.s32.totalorder %s18, 3
      %p71 = por %p69, %p70
      %p72 = scmp.ne.s32.totalorder %s63, %s64
      %p73 = scmp.eq.s32.totalorder %s18, 0
      %p74 = por %p72, %p73
      %p75 = scmp.ne.s32.totalorder %s63, %s64
      %p76 = scmp.eq.s32.totalorder %s19, 3
      %p77 = por %p75, %p76
      %p79 = scmp.ne.s32.totalorder %s64, %s78
      %p80 = scmp.eq.s32.totalorder %s19, 0
      %p81 = por %p79, %p80
      %s83 = sadd.s32 %s82, 1
      %p86 = scmp.eq.s32.totalorder %s13, 3
      %p87 = scmp.ne.s32.totalorder %s82, %s84
      %p88 = scmp.eq.s32.totalorder %s13, 0
      %p89 = por %p87, %p88
      %p90 = scmp.ne.s32.totalorder %s82, %s84
      %p91 = scmp.eq.s32.totalorder %s18, 3
      %p92 = por %p90, %p91
      %p93 = scmp.ne.s32.totalorder %s84, %s85
      %p94 = scmp.eq.s32.totalorder %s18, 0
      %p95 = por %p93, %p94
      %p96 = scmp.ne.s32.totalorder %s84, %s85
      %p97 = scmp.eq.s32.totalorder %s19, 3
      %p98 = por %p96, %p97
      %p100 = scmp.ne.s32.totalorder %s85, %s99
      %p101 = scmp.eq.s32.totalorder %s19, 0
      %p102 = por %p100, %p101
      %s104 = sadd.s32 %s103, 1
      %p107 = scmp.eq.s32.totalorder %s13, 3
      %p108 = scmp.ne.s32.totalorder %s103, %s105
      %p109 = scmp.eq.s32.totalorder %s13, 0
      %p110 = por %p108, %p109
      %p111 = scmp.ne.s32.totalorder %s103, %s105
      %p112 = scmp.eq.s32.totalorder %s18, 3
      %p113 = por %p111, %p112
      %p114 = scmp.ne.s32.totalorder %s105, %s106
      %p115 = scmp.eq.s32.totalorder %s18, 0
      %p116 = por %p114, %p115
      %p117 = scmp.ne.s32.totalorder %s105, %s106
      %p118 = scmp.eq.s32.totalorder %s19, 3
      %p119 = por %p117, %p118
      %p121 = scmp.ne.s32.totalorder %s106, %s120
      %p122 = scmp.eq.s32.totalorder %s19, 0
      %p123 = por %p121, %p122
      %s124 = ssub.s32 %s20, %s32
      %s125 = ssub.s32 %s21, %s28
      %s126 = sor.u32 %s124, %s125
      %p127 = scmp.eq.s32.totalorder %s126, 0
      %s129 = sadd.s32 %s128, 1
      %s130 = scalar_select %p127, %s128, %s129
      %p133 = pneg %p127
      %p134 = scmp.eq.s32.totalorder %s13, 3
      %p135 = por %p133, %p134
      %p136 = scmp.ne.s32.totalorder %s128, %s131
      %p137 = scmp.eq.s32.totalorder %s13, 0
      %p138 = por %p136, %p137
      %p139 = scmp.ne.s32.totalorder %s128, %s131
      %p140 = scmp.eq.s32.totalorder %s18, 3
      %p141 = por %p139, %p140
      %p142 = scmp.ne.s32.totalorder %s131, %s132
      %p143 = scmp.eq.s32.totalorder %s18, 0
      %p144 = por %p142, %p143
      %p145 = scmp.ne.s32.totalorder %s131, %s132
      %p146 = scmp.eq.s32.totalorder %s19, 3
      %p147 = por %p145, %p146
      %p149 = scmp.ne.s32.totalorder %s132, %s148
      %p150 = scmp.eq.s32.totalorder %s19, 0
      %p151 = por %p149, %p150
      %p152 = scmp.le.s32.totalorder 1, %s13
      %p153 = scmp.lt.s32.totalorder %s13, 5
      %p154 = pnand %p152, %p153
      %p155 = pneg %p154
      // Predicated region
      $region9: #{tpu_custom_call.1} parent=5 // pred_check
        _
      $region10: #{tpu_custom_call.1} parent=5 // pred_check_branch
        %157 = sbr.rel (%p154) target = $region12
      $region11: #{tpu_custom_call.1} parent=5 // pred_region
        %s158 = ssub.s32 %s13, 1
        // Predicated region
        $region13: #{tpu_custom_call.1} parent=11 // pred_check
          %p159 = pneg %p74
        $region14: #{tpu_custom_call.1} parent=11 // pred_check_branch
          %161 = sbr.rel (%p159) target = $region16
        $region15: #{tpu_custom_call.1} parent=11 // pred_region
          _
        $region16: #{tpu_custom_call.1} parent=11 // pred_fallthru
          _
        // Predicated region
        $region17: #{tpu_custom_call.1} parent=11 // pred_check
          %p162 = pneg %p95
        $region18: #{tpu_custom_call.1} parent=11 // pred_check_branch
          %164 = sbr.rel (%p162) target = $region20
        $region19: #{tpu_custom_call.1} parent=11 // pred_region
          _
        $region20: #{tpu_custom_call.1} parent=11 // pred_fallthru
          _
        // Predicated region
        $region21: #{tpu_custom_call.1} parent=11 // pred_check
          %p165 = pneg %p116
        $region22: #{tpu_custom_call.1} parent=11 // pred_check_branch
          %167 = sbr.rel (%p165) target = $region24
        $region23: #{tpu_custom_call.1} parent=11 // pred_region
          _
        $region24: #{tpu_custom_call.1} parent=11 // pred_fallthru
          _
      $region12: #{tpu_custom_call.1} parent=5 // pred_fallthru
        _
      %p168 = scmp.lt.s32.totalorder %s13, 4
      // Predicated region
      $region25: #{tpu_custom_call.1} parent=5 // pred_check
        %p169 = pneg %p168
      $region26: #{tpu_custom_call.1} parent=5 // pred_check_branch
        %171 = sbr.rel (%p169) target = $region28
      $region27: #{tpu_custom_call.1} parent=5 // pred_region
        // Predicated region
        $region29: #{tpu_custom_call.1} parent=27 // pred_check
          %p172 = pneg %p47
        $region30: #{tpu_custom_call.1} parent=27 // pred_check_branch
          %174 = sbr.rel (%p172) target = $region32
        $region31: #{tpu_custom_call.1} parent=27 // pred_region
          %p175 = scmp.lt.s32.totalorder %s20, 1
          %s176 = scalar_select %p175, %s20, 1
          %p177 = scmp.lt.s32.totalorder %s21, 1
          %s178 = scalar_select %p177, %s21, 1
          %s179 = smul.addr %s178, 30
          %s180 = smul.addr %s176, 60
          %s181 = sadd.s32 %s179, %s180
          %s182 = smul.addr %s181, 4
          %s183 = scalar_lea.vmem %s0, %s182
        $region32: #{tpu_custom_call.1} parent=27 // pred_fallthru
          _
      $region28: #{tpu_custom_call.1} parent=5 // pred_fallthru
        _
      %p184 = scmp.le.s32.totalorder 1, %s13
      %p185 = scmp.lt.s32.totalorder %s13, 5
      %p186 = pnand %p184, %p185
      %p187 = pneg %p186
      // Predicated region
      $region33: #{tpu_custom_call.1} parent=5 // pred_check
        _
      $region34: #{tpu_custom_call.1} parent=5 // pred_check_branch
        %189 = sbr.rel (%p186) target = $region36
      $region35: #{tpu_custom_call.1} parent=5 // pred_region
        %s190 = ssub.s32 %s13, 1
        %p191 = scmp.lt.s32.totalorder %s22, 1
        %s192 = scalar_select %p191, %s22, 1
        %p193 = scmp.lt.s32.totalorder %s23, 1
        %s194 = scalar_select %p193, %s23, 1
        %s195 = smul.addr %s194, 30
        %s196 = smul.addr %s192, 60
        %s197 = sadd.s32 %s195, %s196
        %s198 = smul.addr %s197, 4
        %s199 = scalar_lea.vmem %s0, %s198
        %p200 = pneg %p53
        %p201 = pneg %p50
        %p202 = pneg %p74
        %p203 = pneg %p71
        %p204 = pneg %p95
        %p205 = pneg %p92
        %p206 = pneg %p116
        %p207 = pneg %p113
        %p208 = pneg %p144
        %p209 = pneg %p141
        %s210 = sand.u32 %s131, 1
        %s211 = scalar_lea.sflag [#allocation3], %s210
        %s212 = sand.u32 %s131, 1
        %s213 = smul.addr %s212, 64
        %s214 = scalar_lea.vmem [#allocation2], %s213
        %p215 = scmp.lt.s32.totalorder %s22, 1
        %s216 = scalar_select %p215, %s22, 1
        %p217 = scmp.lt.s32.totalorder %s23, 1
        %s218 = scalar_select %p217, %s23, 1
        %s219 = smul.addr %s218, 30
        %s220 = smul.addr %s216, 60
        %s221 = sadd.s32 %s219, %s220
        %s222 = smul.addr %s221, 4
        %s223 = scalar_lea.vmem %s0, %s222
        %v225 = vld [vmem:[%s223] sm:$0xf]
        %v226 = vld [vmem:[%s223 + $0x4] sm:$0xf]
        %v227 = vld [vmem:[%s223 + $0x8] sm:$0x1]
        %v228 = vld [vmem:[%s223 + $0xc] sm:$0xf]
        %v229 = vld [vmem:[%s223 + $0x10] sm:$0xf]
        %v230 = vld [vmem:[%s223 + $0x14] sm:$0x1]
        %v231 = vld [vmem:[%s223 + $0x18] sm:$0xf]
        %v232 = vld [vmem:[%s223 + $0x1c] sm:$0xf]
        %v233 = vld [vmem:[%s223 + $0x20] sm:$0x1]
        %v234 = vld [vmem:[%s223 + $0x24] sm:$0xf]
        %v235 = vld [vmem:[%s223 + $0x28] sm:$0xf]
        %v236 = vld [vmem:[%s223 + $0x2c] sm:$0x1]
        %v237 = vld [vmem:[%s223 + $0x30] sm:$0xf]
        %v238 = vld [vmem:[%s223 + $0x34] sm:$0xf]
        %v239 = vld [vmem:[%s223 + $0x38] sm:$0x1]
        %v240 = vld [vmem:[%s223 + $0x3c] sm:$0xf]
        %v241 = vld [vmem:[%s223 + $0x40] sm:$0xf]
        %v242 = vld [vmem:[%s223 + $0x44] sm:$0x1]
        %v243 = vld [vmem:[%s223 + $0x48] sm:$0xf]
        %v244 = vld [vmem:[%s223 + $0x4c] sm:$0xf]
        %v245 = vld [vmem:[%s223 + $0x50] sm:$0x1]
        %v246 = vld [vmem:[%s223 + $0x54] sm:$0xf]
        %v247 = vld [vmem:[%s223 + $0x58] sm:$0xf]
        %v248 = vld [vmem:[%s223 + $0x5c] sm:$0x1]
        %v249 = vld [vmem:[%s223 + $0x60] sm:$0xf]
        %v250 = vld [vmem:[%s223 + $0x64] sm:$0xf]
        %v251 = vld [vmem:[%s223 + $0x68] sm:$0x1]
        %v252 = vld [vmem:[%s223 + $0x6c] sm:$0xf]
        %v253 = vld [vmem:[%s223 + $0x70] sm:$0xf]
        %v254 = vld [vmem:[%s223 + $0x74] sm:$0x1]
        %v255 = vld [vmem:[%s1] sm:$0xf]
        %v256 = vld [vmem:[%s1 + $0x4] sm:$0xf]
        %v257 = vld [vmem:[%s1 + $0x8] sm:$0xf]
        %v258 = vld [vmem:[%s1 + $0xc] sm:$0xf]
        %v259 = vld [vmem:[%s1 + $0x10] sm:$0xf]
        %v260 = vld [vmem:[%s1 + $0x14] sm:$0xf]
        %v261 = vld [vmem:[%s1 + $0x18] sm:$0xf]
        %v262 = vld [vmem:[%s1 + $0x1c] sm:$0xf]
        %v263 = vld [vmem:[%s1 + $0x20] sm:$0xf]
        %v264 = vld [vmem:[%s1 + $0x24] sm:$0xf]
        %v265 = vld [vmem:[%s1 + $0x28] sm:$0xf]
        %v266 = vld [vmem:[%s1 + $0x2c] sm:$0xf]
        %v267 = vld [vmem:[%s1 + $0x30] sm:$0xf]
        %v268 = vld [vmem:[%s1 + $0x34] sm:$0xf]
        %v269 = vld [vmem:[%s1 + $0x38] sm:$0xf]
        %v270 = vld [vmem:[%s1 + $0x3c] sm:$0xf]
        %vm271 = vsmask.f32 3328
        %vm272 = vsmask.f32 7440
        %vm273 = vmor %vm271, %vm272
        %v275 = vshrl.u32 %v225, 16
        %v277 = vrot.slane %v275, 4
        %v278 = vshll.u32 %v225, 16
        %v280 = vrot.slane %v278, 5
        %v281 = vor.u32 %v277, %v280
        %v282 = vrot.slane %v281, 4
        %v284 = vshll.u32 %v226, 16
        %v286 = vrot.slane %v284, 5
        %v287 = vsel %vm273, %v282, %v286
        %v288 = vshrl.u32 %v226, 16
        %v290 = vrot.slane %v288, 4
        %v291 = vor.u32 %v290, %v286
        %v292 = vrot.slane %v291, 4
        %v294 = vshll.u32 %v227, 16
        %v296 = vrot.slane %v294, 5
        %v297 = vsel %vm273, %v292, %v296
        %v299 = vshrl.u32 %v228, 16
        %v301 = vrot.slane %v299, 4
        %v302 = vshll.u32 %v228, 16
        %v304 = vrot.slane %v302, 5
        %v305 = vor.u32 %v301, %v304
        %v306 = vrot.slane %v305, 4
        %v308 = vshll.u32 %v229, 16
        %v310 = vrot.slane %v308, 5
        %v311 = vsel %vm273, %v306, %v310
        %v312 = vshrl.u32 %v229, 16
        %v314 = vrot.slane %v312, 4
        %v315 = vor.u32 %v314, %v310
        %v316 = vrot.slane %v315, 4
        %v318 = vshll.u32 %v230, 16
        %v320 = vrot.slane %v318, 5
        %v321 = vsel %vm273, %v316, %v320
        %v323 = vshrl.u32 %v231, 16
        %v325 = vrot.slane %v323, 4
        %v326 = vshll.u32 %v231, 16
        %v328 = vrot.slane %v326, 5
        %v329 = vor.u32 %v325, %v328
        %v330 = vrot.slane %v329, 4
        %v332 = vshll.u32 %v232, 16
        %v334 = vrot.slane %v332, 5
        %v335 = vsel %vm273, %v330, %v334
        %v336 = vshrl.u32 %v232, 16
        %v338 = vrot.slane %v336, 4
        %v339 = vor.u32 %v338, %v334
        %v340 = vrot.slane %v339, 4
        %v342 = vshll.u32 %v233, 16
        %v344 = vrot.slane %v342, 5
        %v345 = vsel %vm273, %v340, %v344
        %v347 = vshrl.u32 %v234, 16
        %v349 = vrot.slane %v347, 4
        %v350 = vshll.u32 %v234, 16
        %v352 = vrot.slane %v350, 5
        %v353 = vor.u32 %v349, %v352
        %v354 = vrot.slane %v353, 4
        %v356 = vshll.u32 %v235, 16
        %v358 = vrot.slane %v356, 5
        %v359 = vsel %vm273, %v354, %v358
        %v360 = vshrl.u32 %v235, 16
        %v362 = vrot.slane %v360, 4
        %v363 = vor.u32 %v362, %v358
        %v364 = vrot.slane %v363, 4
        %v366 = vshll.u32 %v236, 16
        %v368 = vrot.slane %v366, 5
        %v369 = vsel %vm273, %v364, %v368
        %v371 = vshrl.u32 %v237, 16
        %v373 = vrot.slane %v371, 4
        %v374 = vshll.u32 %v237, 16
        %v376 = vrot.slane %v374, 5
        %v377 = vor.u32 %v373, %v376
        %v378 = vrot.slane %v377, 4
        %v380 = vshll.u32 %v238, 16
        %v382 = vrot.slane %v380, 5
        %v383 = vsel %vm273, %v378, %v382
        %v384 = vshrl.u32 %v238, 16
        %v386 = vrot.slane %v384, 4
        %v387 = vor.u32 %v386, %v382
        %v388 = vrot.slane %v387, 4
        %v390 = vshll.u32 %v239, 16
        %v392 = vrot.slane %v390, 5
        %v393 = vsel %vm273, %v388, %v392
        %v395 = vshrl.u32 %v240, 16
        %v397 = vrot.slane %v395, 4
        %v398 = vshll.u32 %v240, 16
        %v400 = vrot.slane %v398, 5
        %v401 = vor.u32 %v397, %v400
        %v402 = vrot.slane %v401, 4
        %v404 = vshll.u32 %v241, 16
        %v406 = vrot.slane %v404, 5
        %v407 = vsel %vm273, %v402, %v406
        %v408 = vshrl.u32 %v241, 16
        %v410 = vrot.slane %v408, 4
        %v411 = vor.u32 %v410, %v406
        %v412 = vrot.slane %v411, 4
        %v414 = vshll.u32 %v242, 16
        %v416 = vrot.slane %v414, 5
        %v417 = vsel %vm273, %v412, %v416
        %v419 = vshrl.u32 %v243, 16
        %v421 = vrot.slane %v419, 4
        %v422 = vshll.u32 %v243, 16
        %v424 = vrot.slane %v422, 5
        %v425 = vor.u32 %v421, %v424
        %v426 = vrot.slane %v425, 4
        %v428 = vshll.u32 %v244, 16
        %v430 = vrot.slane %v428, 5
        %v431 = vsel %vm273, %v426, %v430
        %v432 = vshrl.u32 %v244, 16
        %v434 = vrot.slane %v432, 4
        %v435 = vor.u32 %v434, %v430
        %v436 = vrot.slane %v435, 4
        %v438 = vshll.u32 %v245, 16
        %v440 = vrot.slane %v438, 5
        %v441 = vsel %vm273, %v436, %v440
        %v443 = vshrl.u32 %v246, 16
        %v445 = vrot.slane %v443, 4
        %v446 = vshll.u32 %v246, 16
        %v448 = vrot.slane %v446, 5
        %v449 = vor.u32 %v445, %v448
        %v450 = vrot.slane %v449, 4
        %v452 = vshll.u32 %v247, 16
        %v454 = vrot.slane %v452, 5
        %v455 = vsel %vm273, %v450, %v454
        %v456 = vshrl.u32 %v247, 16
        %v458 = vrot.slane %v456, 4
        %v459 = vor.u32 %v458, %v454
        %v460 = vrot.slane %v459, 4
        %v462 = vshll.u32 %v248, 16
        %v464 = vrot.slane %v462, 5
        %v465 = vsel %vm273, %v460, %v464
        %s466 = scalar_lea.vmem %s1, 64
        %v467 = vld [vmem:[%s466] sm:$0xf]
        %v468 = vld [vmem:[%s466 + $0x4] sm:$0xf]
        %v469 = vld [vmem:[%s466 + $0x8] sm:$0xf]
        %v470 = vld [vmem:[%s466 + $0xc] sm:$0xf]
        %v471 = vld [vmem:[%s466 + $0x10] sm:$0xf]
        %v472 = vld [vmem:[%s466 + $0x14] sm:$0xf]
        %v473 = vld [vmem:[%s466 + $0x18] sm:$0xf]
        %v474 = vld [vmem:[%s466 + $0x1c] sm:$0xf]
        %v475 = vld [vmem:[%s466 + $0x20] sm:$0xf]
        %v476 = vld [vmem:[%s466 + $0x24] sm:$0xf]
        %v477 = vld [vmem:[%s466 + $0x28] sm:$0xf]
        %v478 = vld [vmem:[%s466 + $0x2c] sm:$0xf]
        %v479 = vld [vmem:[%s466 + $0x30] sm:$0xf]
        %v480 = vld [vmem:[%s466 + $0x34] sm:$0xf]
        %v481 = vld [vmem:[%s466 + $0x38] sm:$0xf]
        %v482 = vld [vmem:[%s466 + $0x3c] sm:$0xf]
        %v483 = vunpack.c.l.b16 %v287
        %v484 = vunpack.c.l.b16 %v297
        %v485 = vunpack.c.l.b16 %v311
        %v486 = vunpack.c.l.b16 %v321
        %v487 = vunpack.c.l.b16 %v335
        %v488 = vunpack.c.l.b16 %v345
        %v489 = vunpack.c.l.b16 %v359
        %v490 = vunpack.c.l.b16 %v369
        %v491 = vunpack.c.l.b16 %v383
        %v492 = vunpack.c.l.b16 %v393
        %v493 = vunpack.c.l.b16 %v407
        %v494 = vunpack.c.l.b16 %v417
        %v495 = vunpack.c.l.b16 %v431
        %v496 = vunpack.c.l.b16 %v441
        %v497 = vunpack.c.l.b16 %v455
        %v498 = vunpack.c.l.b16 %v465
        %v499 = vpack.c.b16 %v484, %v483
        %v500 = vpack.c.b16 %v486, %v485
        %v501 = vpack.c.b16 %v488, %v487
        %v502 = vpack.c.b16 %v490, %v489
        %v503 = vpack.c.b16 %v492, %v491
        %v504 = vpack.c.b16 %v494, %v493
        %v505 = vpack.c.b16 %v496, %v495
        %v506 = vpack.c.b16 %v498, %v497
        %v531 = vunpack.c.l.b16 %v467
        %v532 = vunpack.c.l.b16 %v468
        %v533 = vunpack.c.l.b16 %v469
        %v534 = vunpack.c.l.b16 %v470
        %v535 = vunpack.c.l.b16 %v471
        %v536 = vunpack.c.l.b16 %v472
        %v537 = vunpack.c.l.b16 %v473
        %v538 = vunpack.c.l.b16 %v474
        %v539 = vunpack.c.l.b16 %v475
        %v540 = vunpack.c.l.b16 %v476
        %v541 = vunpack.c.l.b16 %v477
        %v542 = vunpack.c.l.b16 %v478
        %v543 = vunpack.c.l.b16 %v479
        %v544 = vunpack.c.l.b16 %v480
        %v545 = vunpack.c.l.b16 %v481
        %v546 = vunpack.c.l.b16 %v482
        %v547 = vpack.c.b16 %v532, %v531
        %v548 = vpack.c.b16 %v534, %v533
        %v549 = vpack.c.b16 %v536, %v535
        %v550 = vpack.c.b16 %v538, %v537
        %v551 = vpack.c.b16 %v540, %v539
        %v552 = vpack.c.b16 %v542, %v541
        %v553 = vpack.c.b16 %v544, %v543
        %v554 = vpack.c.b16 %v546, %v545
        %563 = vmatprep.subr.bf16.mxu0 0
        %564 = vmatpush1.bf16.msra.mxu0 %v547
        %565 = vmatprep.subr.bf16.mxu0 0
        %566 = vmatpush1.bf16.msra.mxu0 %v548
        %567 = vmatprep.subr.bf16.mxu0 0
        %568 = vmatpush1.bf16.msra.mxu0 %v549
        %569 = vmatprep.subr.bf16.mxu0 0
        %570 = vmatpush1.bf16.msra.mxu0 %v550
        %571 = vmatprep.subr.bf16.mxu0 0
        %572 = vmatpush1.bf16.msra.mxu0 %v551
        %573 = vmatprep.subr.bf16.mxu0 0
        %574 = vmatpush1.bf16.msra.mxu0 %v552
        %575 = vmatprep.subr.bf16.mxu0 0
        %576 = vmatpush1.bf16.msra.mxu0 %v553
        %577 = vmatprep.subr.bf16.mxu0 0
        %578 = vmatpush1.bf16.msra.mxu0 %v554
        %579 = vmatprep.subr.bf16.mxu0 0
        %580 = vmatpush1.bf16.msra.mxu0 0
        %581 = vmatprep.subr.bf16.mxu0 0
        %582 = vmatpush1.bf16.msra.mxu0 0
        %583 = vmatprep.subr.bf16.mxu0 0
        %584 = vmatpush1.bf16.msra.mxu0 0
        %585 = vmatprep.subr.bf16.mxu0 0
        %586 = vmatpush1.bf16.msra.mxu0 0
        %587 = vmatprep.subr.bf16.mxu0 0
        %588 = vmatpush1.bf16.msra.mxu0 0
        %589 = vmatprep.subr.bf16.mxu0 0
        %590 = vmatpush1.bf16.msra.mxu0 0
        %591 = vmatprep.subr.bf16.mxu0 0
        %592 = vmatpush1.bf16.msra.mxu0 0
        %593 = vmatprep.subr.bf16.mxu0 0
        %594 = vmatpush1.bf16.msra.mxu0 0
        %595 = vmatprep.mubr.bf16.mxu0 0
        %596 = vmatmul.mubr.bf16.gmra.mrb[0].mxu0 %v499
        %v597 = vpop.f32.mrb[0].mxu0
        %v598 = vadd.f32 0.0, %v597
        %v599 = vpop.f32.mrb[0].mxu0
        %v600 = vpop.f32.mrb[0].mxu0
        %v601 = vadd.f32 0.0, %v600
        %v602 = vpop.f32.mrb[0].mxu0
        %603 = vmatprep.mubr.bf16.mxu0 0
        %604 = vmatmul.mubr.bf16.gmra.mrb[0].mxu0 %v500
        %v605 = vpop.f32.mrb[0].mxu0
        %v606 = vadd.f32 0.0, %v605
        %v607 = vpop.f32.mrb[0].mxu0
        %v608 = vpop.f32.mrb[0].mxu0
        %v609 = vadd.f32 0.0, %v608
        %v610 = vpop.f32.mrb[0].mxu0
        %611 = vmatprep.mubr.bf16.mxu0 0
        %612 = vmatmul.mubr.bf16.gmra.mrb[0].mxu0 %v501
        %v613 = vpop.f32.mrb[0].mxu0
        %v614 = vadd.f32 0.0, %v613
        %v615 = vpop.f32.mrb[0].mxu0
        %v616 = vpop.f32.mrb[0].mxu0
        %v617 = vadd.f32 0.0, %v616
        %v618 = vpop.f32.mrb[0].mxu0
        %619 = vmatprep.mubr.bf16.mxu0 0
        %620 = vmatmul.mubr.bf16.gmra.mrb[0].mxu0 %v502
        %v621 = vpop.f32.mrb[0].mxu0
        %v622 = vadd.f32 0.0, %v621
        %v623 = vpop.f32.mrb[0].mxu0
        %v624 = vpop.f32.mrb[0].mxu0
        %v625 = vadd.f32 0.0, %v624
        %v626 = vpop.f32.mrb[0].mxu0
        %627 = vmatprep.mubr.bf16.mxu0 0
        %628 = vmatmul.mubr.bf16.gmra.mrb[0].mxu0 %v503
        %v629 = vpop.f32.mrb[0].mxu0
        %v630 = vadd.f32 0.0, %v629
        %v631 = vpop.f32.mrb[0].mxu0
        %v632 = vpop.f32.mrb[0].mxu0
        %v633 = vadd.f32 0.0, %v632
        %v634 = vpop.f32.mrb[0].mxu0
        %635 = vmatprep.mubr.bf16.mxu0 0
        %636 = vmatmul.mubr.bf16.gmra.mrb[0].mxu0 %v504
        %v637 = vpop.f32.mrb[0].mxu0
        %v638 = vadd.f32 0.0, %v637
        %v639 = vpop.f32.mrb[0].mxu0
        %v640 = vpop.f32.mrb[0].mxu0
        %v641 = vadd.f32 0.0, %v640
        %v642 = vpop.f32.mrb[0].mxu0
        %643 = vmatprep.mubr.bf16.mxu0 0
        %644 = vmatmul.mubr.bf16.gmra.mrb[0].mxu0 %v505
        %v645 = vpop.f32.mrb[0].mxu0
        %v646 = vadd.f32 0.0, %v645
        %v647 = vpop.f32.mrb[0].mxu0
        %v648 = vpop.f32.mrb[0].mxu0
        %v649 = vadd.f32 0.0, %v648
        %v650 = vpop.f32.mrb[0].mxu0
        %651 = vmatprep.mubr.bf16.mxu0 0
        %652 = vmatmul.mubr.bf16.gmra.mrb[0].mxu0 %v506
        %v653 = vpop.f32.mrb[0].mxu0
        %v654 = vadd.f32 0.0, %v653
        %v655 = vpop.f32.mrb[0].mxu0
        %v656 = vpop.f32.mrb[0].mxu0
        %v657 = vadd.f32 0.0, %v656
        %v658 = vpop.f32.mrb[0].mxu0
        %659 = vdwg.mxu0
        %v676 = vunpack.c.l.b16 %v225
        %v677 = vunpack.c.l.b16 %v226
        %v678 = vunpack.c.l.b16 %v228
        %v679 = vunpack.c.l.b16 %v229
        %v680 = vunpack.c.l.b16 %v231
        %v681 = vunpack.c.l.b16 %v232
        %v682 = vunpack.c.l.b16 %v234
        %v683 = vunpack.c.l.b16 %v235
        %v684 = vunpack.c.l.b16 %v237
        %v685 = vunpack.c.l.b16 %v238
        %v686 = vunpack.c.l.b16 %v240
        %v687 = vunpack.c.l.b16 %v241
        %v688 = vunpack.c.l.b16 %v243
        %v689 = vunpack.c.l.b16 %v244
        %v690 = vunpack.c.l.b16 %v246
        %v691 = vunpack.c.l.b16 %v247
        %v692 = vpack.c.b16 %v677, %v676
        %v693 = vpack.c.b16 %v679, %v678
        %v694 = vpack.c.b16 %v681, %v680
        %v695 = vpack.c.b16 %v683, %v682
        %v696 = vpack.c.b16 %v685, %v684
        %v697 = vpack.c.b16 %v687, %v686
        %v698 = vpack.c.b16 %v689, %v688
        %v699 = vpack.c.b16 %v691, %v690
        %v724 = vunpack.c.l.b16 %v255
        %v725 = vunpack.c.l.b16 %v256
        %v726 = vunpack.c.l.b16 %v257
        %v727 = vunpack.c.l.b16 %v258
        %v728 = vunpack.c.l.b16 %v259
        %v729 = vunpack.c.l.b16 %v260
        %v730 = vunpack.c.l.b16 %v261
        %v731 = vunpack.c.l.b16 %v262
        %v732 = vunpack.c.l.b16 %v263
        %v733 = vunpack.c.l.b16 %v264
        %v734 = vunpack.c.l.b16 %v265
        %v735 = vunpack.c.l.b16 %v266
        %v736 = vunpack.c.l.b16 %v267
        %v737 = vunpack.c.l.b16 %v268
        %v738 = vunpack.c.l.b16 %v269
        %v739 = vunpack.c.l.b16 %v270
        %v740 = vpack.c.b16 %v725, %v724
        %v741 = vpack.c.b16 %v727, %v726
        %v742 = vpack.c.b16 %v729, %v728
        %v743 = vpack.c.b16 %v731, %v730
        %v744 = vpack.c.b16 %v733, %v732
        %v745 = vpack.c.b16 %v735, %v734
        %v746 = vpack.c.b16 %v737, %v736
        %v747 = vpack.c.b16 %v739, %v738
        %756 = vmatprep.subr.bf16.mxu0 0
        %757 = vmatpush1.bf16.msra.mxu0 %v740
        %758 = vmatprep.subr.bf16.mxu0 0
        %759 = vmatpush1.bf16.msra.mxu0 %v741
        %760 = vmatprep.subr.bf16.mxu0 0
        %761 = vmatpush1.bf16.msra.mxu0 %v742
        %762 = vmatprep.subr.bf16.mxu0 0
        %763 = vmatpush1.bf16.msra.mxu0 %v743
        %764 = vmatprep.subr.bf16.mxu0 0
        %765 = vmatpush1.bf16.msra.mxu0 %v744
        %766 = vmatprep.subr.bf16.mxu0 0
        %767 = vmatpush1.bf16.msra.mxu0 %v745
        %768 = vmatprep.subr.bf16.mxu0 0
        %769 = vmatpush1.bf16.msra.mxu0 %v746
        %770 = vmatprep.subr.bf16.mxu0 0
        %771 = vmatpush1.bf16.msra.mxu0 %v747
        %772 = vmatprep.subr.bf16.mxu0 0
        %773 = vmatpush1.bf16.msra.mxu0 0
        %774 = vmatprep.subr.bf16.mxu0 0
        %775 = vmatpush1.bf16.msra.mxu0 0
        %776 = vmatprep.subr.bf16.mxu0 0
        %777 = vmatpush1.bf16.msra.mxu0 0
        %778 = vmatprep.subr.bf16.mxu0 0
        %779 = vmatpush1.bf16.msra.mxu0 0
        %780 = vmatprep.subr.bf16.mxu0 0
        %781 = vmatpush1.bf16.msra.mxu0 0
        %782 = vmatprep.subr.bf16.mxu0 0
        %783 = vmatpush1.bf16.msra.mxu0 0
        %784 = vmatprep.subr.bf16.mxu0 0
        %785 = vmatpush1.bf16.msra.mxu0 0
        %786 = vmatprep.subr.bf16.mxu0 0
        %787 = vmatpush1.bf16.msra.mxu0 0
        %788 = vmatprep.mubr.bf16.mxu0 0
        %789 = vmatmul.mubr.bf16.gmra.mrb[0].mxu0 %v692
        %v790 = vpop.f32.mrb[0].mxu0
        %v791 = vadd.f32 %v598, %v790
        %v792 = vpop.f32.mrb[0].mxu0
        %v793 = vpop.f32.mrb[0].mxu0
        %v794 = vadd.f32 %v601, %v793
        %v795 = vpop.f32.mrb[0].mxu0
        %796 = vmatprep.mubr.bf16.mxu0 0
        %797 = vmatmul.mubr.bf16.gmra.mrb[0].mxu0 %v693
        %v798 = vpop.f32.mrb[0].mxu0
        %v799 = vadd.f32 %v606, %v798
        %v800 = vpop.f32.mrb[0].mxu0
        %v801 = vpop.f32.mrb[0].mxu0
        %v802 = vadd.f32 %v609, %v801
        %v803 = vpop.f32.mrb[0].mxu0
        %804 = vmatprep.mubr.bf16.mxu0 0
        %805 = vmatmul.mubr.bf16.gmra.mrb[0].mxu0 %v694
        %v806 = vpop.f32.mrb[0].mxu0
        %v807 = vadd.f32 %v614, %v806
        %v808 = vpop.f32.mrb[0].mxu0
        %v809 = vpop.f32.mrb[0].mxu0
        %v810 = vadd.f32 %v617, %v809
        %v811 = vpop.f32.mrb[0].mxu0
        %812 = vmatprep.mubr.bf16.mxu0 0
        %813 = vmatmul.mubr.bf16.gmra.mrb[0].mxu0 %v695
        %v814 = vpop.f32.mrb[0].mxu0
        %v815 = vadd.f32 %v622, %v814
        %v816 = vpop.f32.mrb[0].mxu0
        %v817 = vpop.f32.mrb[0].mxu0
        %v818 = vadd.f32 %v625, %v817
        %v819 = vpop.f32.mrb[0].mxu0
        %820 = vmatprep.mubr.bf16.mxu0 0
        %821 = vmatmul.mubr.bf16.gmra.mrb[0].mxu0 %v696
        %v822 = vpop.f32.mrb[0].mxu0
        %v823 = vadd.f32 %v630, %v822
        %v824 = vpop.f32.mrb[0].mxu0
        %v825 = vpop.f32.mrb[0].mxu0
        %v826 = vadd.f32 %v633, %v825
        %v827 = vpop.f32.mrb[0].mxu0
        %828 = vmatprep.mubr.bf16.mxu0 0
        %829 = vmatmul.mubr.bf16.gmra.mrb[0].mxu0 %v697
        %v830 = vpop.f32.mrb[0].mxu0
        %v831 = vadd.f32 %v638, %v830
        %v832 = vpop.f32.mrb[0].mxu0
        %v833 = vpop.f32.mrb[0].mxu0
        %v834 = vadd.f32 %v641, %v833
        %v835 = vpop.f32.mrb[0].mxu0
        %836 = vmatprep.mubr.bf16.mxu0 0
        %837 = vmatmul.mubr.bf16.gmra.mrb[0].mxu0 %v698
        %v838 = vpop.f32.mrb[0].mxu0
        %v839 = vadd.f32 %v646, %v838
        %v840 = vpop.f32.mrb[0].mxu0
        %v841 = vpop.f32.mrb[0].mxu0
        %v842 = vadd.f32 %v649, %v841
        %v843 = vpop.f32.mrb[0].mxu0
        %844 = vmatprep.mubr.bf16.mxu0 0
        %845 = vmatmul.mubr.bf16.gmra.mrb[0].mxu0 %v699
        %v846 = vpop.f32.mrb[0].mxu0
        %v847 = vadd.f32 %v654, %v846
        %v848 = vpop.f32.mrb[0].mxu0
        %v849 = vpop.f32.mrb[0].mxu0
        %v850 = vadd.f32 %v657, %v849
        %v851 = vpop.f32.mrb[0].mxu0
        %852 = vdwg.mxu0
        %vm861 = vcmask 1042432
        %vm862 = vcmask 1046532
        %vm863 = vmor %vm861, %vm862
        %v864 = vrot.slane %v225, 5
        %v865 = vrot.slane %v864, 4
        %v866 = vrot.slane %v226, 5
        %v867 = vsel %vm863, %v865, %v866
        %v868 = vrot.slane %v866, 4
        %v869 = vrot.slane %v227, 5
        %v870 = vsel %vm863, %v868, %v869
        %v871 = vrot.slane %v228, 5
        %v872 = vrot.slane %v871, 4
        %v873 = vrot.slane %v229, 5
        %v874 = vsel %vm863, %v872, %v873
        %v875 = vrot.slane %v873, 4
        %v876 = vrot.slane %v230, 5
        %v877 = vsel %vm863, %v875, %v876
        %v878 = vrot.slane %v231, 5
        %v879 = vrot.slane %v878, 4
        %v880 = vrot.slane %v232, 5
        %v881 = vsel %vm863, %v879, %v880
        %v882 = vrot.slane %v880, 4
        %v883 = vrot.slane %v233, 5
        %v884 = vsel %vm863, %v882, %v883
        %v885 = vrot.slane %v234, 5
        %v886 = vrot.slane %v885, 4
        %v887 = vrot.slane %v235, 5
        %v888 = vsel %vm863, %v886, %v887
        %v889 = vrot.slane %v887, 4
        %v890 = vrot.slane %v236, 5
        %v891 = vsel %vm863, %v889, %v890
        %v892 = vrot.slane %v237, 5
        %v893 = vrot.slane %v892, 4
        %v894 = vrot.slane %v238, 5
        %v895 = vsel %vm863, %v893, %v894
        %v896 = vrot.slane %v894, 4
        %v897 = vrot.slane %v239, 5
        %v898 = vsel %vm863, %v896, %v897
        %v899 = vrot.slane %v240, 5
        %v900 = vrot.slane %v899, 4
        %v901 = vrot.slane %v241, 5
        %v902 = vsel %vm863, %v900, %v901
        %v903 = vrot.slane %v901, 4
        %v904 = vrot.slane %v242, 5
        %v905 = vsel %vm863, %v903, %v904
        %v906 = vrot.slane %v243, 5
        %v907 = vrot.slane %v906, 4
        %v908 = vrot.slane %v244, 5
        %v909 = vsel %vm863, %v907, %v908
        %v910 = vrot.slane %v908, 4
        %v911 = vrot.slane %v245, 5
        %v912 = vsel %vm863, %v910, %v911
        %v913 = vrot.slane %v246, 5
        %v914 = vrot.slane %v913, 4
        %v915 = vrot.slane %v247, 5
        %v916 = vsel %vm863, %v914, %v915
        %v917 = vrot.slane %v915, 4
        %v918 = vrot.slane %v248, 5
        %v919 = vsel %vm863, %v917, %v918
        %s920 = scalar_lea.vmem %s1, 128
        %v921 = vld [vmem:[%s920] sm:$0xf]
        %v922 = vld [vmem:[%s920 + $0x4] sm:$0xf]
        %v923 = vld [vmem:[%s920 + $0x8] sm:$0xf]
        %v924 = vld [vmem:[%s920 + $0xc] sm:$0xf]
        %v925 = vld [vmem:[%s920 + $0x10] sm:$0xf]
        %v926 = vld [vmem:[%s920 + $0x14] sm:$0xf]
        %v927 = vld [vmem:[%s920 + $0x18] sm:$0xf]
        %v928 = vld [vmem:[%s920 + $0x1c] sm:$0xf]
        %v929 = vld [vmem:[%s920 + $0x20] sm:$0xf]
        %v930 = vld [vmem:[%s920 + $0x24] sm:$0xf]
        %v931 = vld [vmem:[%s920 + $0x28] sm:$0xf]
        %v932 = vld [vmem:[%s920 + $0x2c] sm:$0xf]
        %v933 = vld [vmem:[%s920 + $0x30] sm:$0xf]
        %v934 = vld [vmem:[%s920 + $0x34] sm:$0xf]
        %v935 = vld [vmem:[%s920 + $0x38] sm:$0xf]
        %v936 = vld [vmem:[%s920 + $0x3c] sm:$0xf]
        %v937 = vunpack.c.l.b16 %v867
        %v938 = vunpack.c.l.b16 %v870
        %v939 = vunpack.c.l.b16 %v874
        %v940 = vunpack.c.l.b16 %v877
        %v941 = vunpack.c.l.b16 %v881
        %v942 = vunpack.c.l.b16 %v884
        %v943 = vunpack.c.l.b16 %v888
        %v944 = vunpack.c.l.b16 %v891
        %v945 = vunpack.c.l.b16 %v895
        %v946 = vunpack.c.l.b16 %v898
        %v947 = vunpack.c.l.b16 %v902
        %v948 = vunpack.c.l.b16 %v905
        %v949 = vunpack.c.l.b16 %v909
        %v950 = vunpack.c.l.b16 %v912
        %v951 = vunpack.c.l.b16 %v916
        %v952 = vunpack.c.l.b16 %v919
        %v953 = vpack.c.b16 %v938, %v937
        %v954 = vpack.c.b16 %v940, %v939
        %v955 = vpack.c.b16 %v942, %v941
        %v956 = vpack.c.b16 %v944, %v943
        %v957 = vpack.c.b16 %v946, %v945
        %v958 = vpack.c.b16 %v948, %v947
        %v959 = vpack.c.b16 %v950, %v949
        %v960 = vpack.c.b16 %v952, %v951
        %v985 = vunpack.c.l.b16 %v921
        %v986 = vunpack.c.l.b16 %v922
        %v987 = vunpack.c.l.b16 %v923
        %v988 = vunpack.c.l.b16 %v924
        %v989 = vunpack.c.l.b16 %v925
        %v990 = vunpack.c.l.b16 %v926
        %v991 = vunpack.c.l.b16 %v927
        %v992 = vunpack.c.l.b16 %v928
        %v993 = vunpack.c.l.b16 %v929
        %v994 = vunpack.c.l.b16 %v930
        %v995 = vunpack.c.l.b16 %v931
        %v996 = vunpack.c.l.b16 %v932
        %v997 = vunpack.c.l.b16 %v933
        %v998 = vunpack.c.l.b16 %v934
        %v999 = vunpack.c.l.b16 %v935
        %v1000 = vunpack.c.l.b16 %v936
        %v1001 = vpack.c.b16 %v986, %v985
        %v1002 = vpack.c.b16 %v988, %v987
        %v1003 = vpack.c.b16 %v990, %v989
        %v1004 = vpack.c.b16 %v992, %v991
        %v1005 = vpack.c.b16 %v994, %v993
        %v1006 = vpack.c.b16 %v996, %v995
        %v1007 = vpack.c.b16 %v998, %v997
        %v1008 = vpack.c.b16 %v1000, %v999
        %1017 = vmatprep.subr.bf16.mxu0 0
        %1018 = vmatpush1.bf16.msra.mxu0 %v1001
        %1019 = vmatprep.subr.bf16.mxu0 0
        %1020 = vmatpush1.bf16.msra.mxu0 %v1002
        %1021 = vmatprep.subr.bf16.mxu0 0
        %1022 = vmatpush1.bf16.msra.mxu0 %v1003
        %1023 = vmatprep.subr.bf16.mxu0 0
        %1024 = vmatpush1.bf16.msra.mxu0 %v1004
        %1025 = vmatprep.subr.bf16.mxu0 0
        %1026 = vmatpush1.bf16.msra.mxu0 %v1005
        %1027 = vmatprep.subr.bf16.mxu0 0
        %1028 = vmatpush1.bf16.msra.mxu0 %v1006
        %1029 = vmatprep.subr.bf16.mxu0 0
        %1030 = vmatpush1.bf16.msra.mxu0 %v1007
        %1031 = vmatprep.subr.bf16.mxu0 0
        %1032 = vmatpush1.bf16.msra.mxu0 %v1008
        %1033 = vmatprep.subr.bf16.mxu0 0
        %1034 = vmatpush1.bf16.msra.mxu0 0
        %1035 = vmatprep.subr.bf16.mxu0 0
        %1036 = vmatpush1.bf16.msra.mxu0 0
        %1037 = vmatprep.subr.bf16.mxu0 0
        %1038 = vmatpush1.bf16.msra.mxu0 0
        %1039 = vmatprep.subr.bf16.mxu0 0
        %1040 = vmatpush1.bf16.msra.mxu0 0
        %1041 = vmatprep.subr.bf16.mxu0 0
        %1042 = vmatpush1.bf16.msra.mxu0 0
        %1043 = vmatprep.subr.bf16.mxu0 0
        %1044 = vmatpush1.bf16.msra.mxu0 0
        %1045 = vmatprep.subr.bf16.mxu0 0
        %1046 = vmatpush1.bf16.msra.mxu0 0
        %1047 = vmatprep.subr.bf16.mxu0 0
        %1048 = vmatpush1.bf16.msra.mxu0 0
        %1049 = vmatprep.mubr.bf16.mxu0 0
        %1050 = vmatmul.mubr.bf16.gmra.mrb[0].mxu0 %v953
        %v1051 = vpop.f32.mrb[0].mxu0
        %v1052 = vadd.f32 0.0, %v1051
        %v1053 = vpop.f32.mrb[0].mxu0
        %v1054 = vpop.f32.mrb[0].mxu0
        %v1055 = vadd.f32 0.0, %v1054
        %v1056 = vpop.f32.mrb[0].mxu0
        %1057 = vmatprep.mubr.bf16.mxu0 0
        %1058 = vmatmul.mubr.bf16.gmra.mrb[0].mxu0 %v954
        %v1059 = vpop.f32.mrb[0].mxu0
        %v1060 = vadd.f32 0.0, %v1059
        %v1061 = vpop.f32.mrb[0].mxu0
        %v1062 = vpop.f32.mrb[0].mxu0
        %v1063 = vadd.f32 0.0, %v1062
        %v1064 = vpop.f32.mrb[0].mxu0
        %1065 = vmatprep.mubr.bf16.mxu0 0
        %1066 = vmatmul.mubr.bf16.gmra.mrb[0].mxu0 %v955
        %v1067 = vpop.f32.mrb[0].mxu0
        %v1068 = vadd.f32 0.0, %v1067
        %v1069 = vpop.f32.mrb[0].mxu0
        %v1070 = vpop.f32.mrb[0].mxu0
        %v1071 = vadd.f32 0.0, %v1070
        %v1072 = vpop.f32.mrb[0].mxu0
        %1073 = vmatprep.mubr.bf16.mxu0 0
        %1074 = vmatmul.mubr.bf16.gmra.mrb[0].mxu0 %v956
        %v1075 = vpop.f32.mrb[0].mxu0
        %v1076 = vadd.f32 0.0, %v1075
        %v1077 = vpop.f32.mrb[0].mxu0
        %v1078 = vpop.f32.mrb[0].mxu0
        %v1079 = vadd.f32 0.0, %v1078
        %v1080 = vpop.f32.mrb[0].mxu0
        %1081 = vmatprep.mubr.bf16.mxu0 0
        %1082 = vmatmul.mubr.bf16.gmra.mrb[0].mxu0 %v957
        %v1083 = vpop.f32.mrb[0].mxu0
        %v1084 = vadd.f32 0.0, %v1083
        %v1085 = vpop.f32.mrb[0].mxu0
        %v1086 = vpop.f32.mrb[0].mxu0
        %v1087 = vadd.f32 0.0, %v1086
        %v1088 = vpop.f32.mrb[0].mxu0
        %1089 = vmatprep.mubr.bf16.mxu0 0
        %1090 = vmatmul.mubr.bf16.gmra.mrb[0].mxu0 %v958
        %v1091 = vpop.f32.mrb[0].mxu0
        %v1092 = vadd.f32 0.0, %v1091
        %v1093 = vpop.f32.mrb[0].mxu0
        %v1094 = vpop.f32.mrb[0].mxu0
        %v1095 = vadd.f32 0.0, %v1094
        %v1096 = vpop.f32.mrb[0].mxu0
        %1097 = vmatprep.mubr.bf16.mxu0 0
        %1098 = vmatmul.mubr.bf16.gmra.mrb[0].mxu0 %v959
        %v1099 = vpop.f32.mrb[0].mxu0
        %v1100 = vadd.f32 0.0, %v1099
        %v1101 = vpop.f32.mrb[0].mxu0
        %v1102 = vpop.f32.mrb[0].mxu0
        %v1103 = vadd.f32 0.0, %v1102
        %v1104 = vpop.f32.mrb[0].mxu0
        %1105 = vmatprep.mubr.bf16.mxu0 0
        %1106 = vmatmul.mubr.bf16.gmra.mrb[0].mxu0 %v960
        %v1107 = vpop.f32.mrb[0].mxu0
        %v1108 = vadd.f32 0.0, %v1107
        %v1109 = vpop.f32.mrb[0].mxu0
        %v1110 = vpop.f32.mrb[0].mxu0
        %v1111 = vadd.f32 0.0, %v1110
        %v1112 = vpop.f32.mrb[0].mxu0
        %1113 = vdwg.mxu0
        %v1114 = vadd.f32 %v791, %v1052
        %v1115 = vadd.f32 %v794, %v1055
        %v1116 = vadd.f32 %v799, %v1060
        %v1117 = vadd.f32 %v802, %v1063
        %v1118 = vadd.f32 %v807, %v1068
        %v1119 = vadd.f32 %v810, %v1071
        %v1120 = vadd.f32 %v815, %v1076
        %v1121 = vadd.f32 %v818, %v1079
        %v1122 = vadd.f32 %v823, %v1084
        %v1123 = vadd.f32 %v826, %v1087
        %v1124 = vadd.f32 %v831, %v1092
        %v1125 = vadd.f32 %v834, %v1095
        %v1126 = vadd.f32 %v839, %v1100
        %v1127 = vadd.f32 %v842, %v1103
        %v1128 = vadd.f32 %v847, %v1108
        %v1129 = vadd.f32 %v850, %v1111
        %s1130 = scalar_lea.vmem %s1, 192
        %v1131 = vld [vmem:[%s1130] sm:$0xf]
        %v1132 = vld [vmem:[%s1130 + $0x4] sm:$0xf]
        %v1133 = vld [vmem:[%s1130 + $0x8] sm:$0xf]
        %v1134 = vld [vmem:[%s1130 + $0xc] sm:$0xf]
        %v1135 = vld [vmem:[%s1130 + $0x10] sm:$0xf]
        %v1136 = vld [vmem:[%s1130 + $0x14] sm:$0xf]
        %v1137 = vld [vmem:[%s1130 + $0x18] sm:$0xf]
        %v1138 = vld [vmem:[%s1130 + $0x1c] sm:$0xf]
        %v1139 = vld [vmem:[%s1130 + $0x20] sm:$0xf]
        %v1140 = vld [vmem:[%s1130 + $0x24] sm:$0xf]
        %v1141 = vld [vmem:[%s1130 + $0x28] sm:$0xf]
        %v1142 = vld [vmem:[%s1130 + $0x2c] sm:$0xf]
        %v1143 = vld [vmem:[%s1130 + $0x30] sm:$0xf]
        %v1144 = vld [vmem:[%s1130 + $0x34] sm:$0xf]
        %v1145 = vld [vmem:[%s1130 + $0x38] sm:$0xf]
        %v1146 = vld [vmem:[%s1130 + $0x3c] sm:$0xf]
        %v1149 = vunpack.c.l.b16 %v249
        %v1150 = vunpack.c.l.b16 %v250
        %v1151 = vpack.c.b16 %v1150, %v1149
        %v1169 = vunpack.c.l.b16 %v1131
        %v1170 = vunpack.c.l.b16 %v1132
        %v1171 = vunpack.c.l.b16 %v1133
        %v1172 = vunpack.c.l.b16 %v1134
        %v1173 = vunpack.c.l.b16 %v1135
        %v1174 = vunpack.c.l.b16 %v1136
        %v1175 = vunpack.c.l.b16 %v1137
        %v1176 = vunpack.c.l.b16 %v1138
        %v1177 = vunpack.c.l.b16 %v1139
        %v1178 = vunpack.c.l.b16 %v1140
        %v1179 = vunpack.c.l.b16 %v1141
        %v1180 = vunpack.c.l.b16 %v1142
        %v1181 = vunpack.c.l.b16 %v1143
        %v1182 = vunpack.c.l.b16 %v1144
        %v1183 = vunpack.c.l.b16 %v1145
        %v1184 = vunpack.c.l.b16 %v1146
        %v1185 = vpack.c.b16 %v1170, %v1169
        %v1186 = vpack.c.b16 %v1172, %v1171
        %v1187 = vpack.c.b16 %v1174, %v1173
        %v1188 = vpack.c.b16 %v1176, %v1175
        %v1189 = vpack.c.b16 %v1178, %v1177
        %v1190 = vpack.c.b16 %v1180, %v1179
        %v1191 = vpack.c.b16 %v1182, %v1181
        %v1192 = vpack.c.b16 %v1184, %v1183
        %1201 = vmatprep.subr.bf16.mxu0 0
        %1202 = vmatpush1.bf16.msra.mxu0 %v1185
        %1203 = vmatprep.subr.bf16.mxu0 0
        %1204 = vmatpush1.bf16.msra.mxu0 %v1186
        %1205 = vmatprep.subr.bf16.mxu0 0
        %1206 = vmatpush1.bf16.msra.mxu0 %v1187
        %1207 = vmatprep.subr.bf16.mxu0 0
        %1208 = vmatpush1.bf16.msra.mxu0 %v1188
        %1209 = vmatprep.subr.bf16.mxu0 0
        %1210 = vmatpush1.bf16.msra.mxu0 %v1189
        %1211 = vmatprep.subr.bf16.mxu0 0
        %1212 = vmatpush1.bf16.msra.mxu0 %v1190
        %1213 = vmatprep.subr.bf16.mxu0 0
        %1214 = vmatpush1.bf16.msra.mxu0 %v1191
        %1215 = vmatprep.subr.bf16.mxu0 0
        %1216 = vmatpush1.bf16.msra.mxu0 %v1192
        %1217 = vmatprep.subr.bf16.mxu0 0
        %1218 = vmatpush1.bf16.msra.mxu0 0
        %1219 = vmatprep.subr.bf16.mxu0 0
        %1220 = vmatpush1.bf16.msra.mxu0 0
        %1221 = vmatprep.subr.bf16.mxu0 0
        %1222 = vmatpush1.bf16.msra.mxu0 0
        %1223 = vmatprep.subr.bf16.mxu0 0
        %1224 = vmatpush1.bf16.msra.mxu0 0
        %1225 = vmatprep.subr.bf16.mxu0 0
        %1226 = vmatpush1.bf16.msra.mxu0 0
        %1227 = vmatprep.subr.bf16.mxu0 0
        %1228 = vmatpush1.bf16.msra.mxu0 0
        %1229 = vmatprep.subr.bf16.mxu0 0
        %1230 = vmatpush1.bf16.msra.mxu0 0
        %1231 = vmatprep.subr.bf16.mxu0 0
        %1232 = vmatpush1.bf16.msra.mxu0 0
        %1233 = vmatprep.mubr.bf16.mxu0 0
        %1234 = vmatmul.mubr.bf16.gmra.mrb[0].mxu0 %v693
        %v1235 = vpop.f32.mrb[0].mxu0
        %v1236 = vadd.f32 0.0, %v1235
        %v1237 = vpop.f32.mrb[0].mxu0
        %v1238 = vpop.f32.mrb[0].mxu0
        %v1239 = vadd.f32 0.0, %v1238
        %v1240 = vpop.f32.mrb[0].mxu0
        %1241 = vmatprep.mubr.bf16.mxu0 0
        %1242 = vmatmul.mubr.bf16.gmra.mrb[0].mxu0 %v694
        %v1243 = vpop.f32.mrb[0].mxu0
        %v1244 = vadd.f32 0.0, %v1243
        %v1245 = vpop.f32.mrb[0].mxu0
        %v1246 = vpop.f32.mrb[0].mxu0
        %v1247 = vadd.f32 0.0, %v1246
        %v1248 = vpop.f32.mrb[0].mxu0
        %1249 = vmatprep.mubr.bf16.mxu0 0
        %1250 = vmatmul.mubr.bf16.gmra.mrb[0].mxu0 %v695
        %v1251 = vpop.f32.mrb[0].mxu0
        %v1252 = vadd.f32 0.0, %v1251
        %v1253 = vpop.f32.mrb[0].mxu0
        %v1254 = vpop.f32.mrb[0].mxu0
        %v1255 = vadd.f32 0.0, %v1254
        %v1256 = vpop.f32.mrb[0].mxu0
        %1257 = vmatprep.mubr.bf16.mxu0 0
        %1258 = vmatmul.mubr.bf16.gmra.mrb[0].mxu0 %v696
        %v1259 = vpop.f32.mrb[0].mxu0
        %v1260 = vadd.f32 0.0, %v1259
        %v1261 = vpop.f32.mrb[0].mxu0
        %v1262 = vpop.f32.mrb[0].mxu0
        %v1263 = vadd.f32 0.0, %v1262
        %v1264 = vpop.f32.mrb[0].mxu0
        %1265 = vmatprep.mubr.bf16.mxu0 0
        %1266 = vmatmul.mubr.bf16.gmra.mrb[0].mxu0 %v697
        %v1267 = vpop.f32.mrb[0].mxu0
        %v1268 = vadd.f32 0.0, %v1267
        %v1269 = vpop.f32.mrb[0].mxu0
        %v1270 = vpop.f32.mrb[0].mxu0
        %v1271 = vadd.f32 0.0, %v1270
        %v1272 = vpop.f32.mrb[0].mxu0
        %1273 = vmatprep.mubr.bf16.mxu0 0
        %1274 = vmatmul.mubr.bf16.gmra.mrb[0].mxu0 %v698
        %v1275 = vpop.f32.mrb[0].mxu0
        %v1276 = vadd.f32 0.0, %v1275
        %v1277 = vpop.f32.mrb[0].mxu0
        %v1278 = vpop.f32.mrb[0].mxu0
        %v1279 = vadd.f32 0.0, %v1278
        %v1280 = vpop.f32.mrb[0].mxu0
        %1281 = vmatprep.mubr.bf16.mxu0 0
        %1282 = vmatmul.mubr.bf16.gmra.mrb[0].mxu0 %v699
        %v1283 = vpop.f32.mrb[0].mxu0
        %v1284 = vadd.f32 0.0, %v1283
        %v1285 = vpop.f32.mrb[0].mxu0
        %v1286 = vpop.f32.mrb[0].mxu0
        %v1287 = vadd.f32 0.0, %v1286
        %v1288 = vpop.f32.mrb[0].mxu0
        %1289 = vmatprep.mubr.bf16.mxu0 0
        %1290 = vmatmul.mubr.bf16.gmra.mrb[0].mxu0 %v1151
        %v1291 = vpop.f32.mrb[0].mxu0
        %v1292 = vadd.f32 0.0, %v1291
        %v1293 = vpop.f32.mrb[0].mxu0
        %v1294 = vpop.f32.mrb[0].mxu0
        %v1295 = vadd.f32 0.0, %v1294
        %v1296 = vpop.f32.mrb[0].mxu0
        %1297 = vdwg.mxu0
        %v1298 = vadd.f32 %v1114, %v1236
        %v1299 = vadd.f32 %v1115, %v1239
        %v1300 = vadd.f32 %v1116, %v1244
        %v1301 = vadd.f32 %v1117, %v1247
        %v1302 = vadd.f32 %v1118, %v1252
        %v1303 = vadd.f32 %v1119, %v1255
        %v1304 = vadd.f32 %v1120, %v1260
        %v1305 = vadd.f32 %v1121, %v1263
        %v1306 = vadd.f32 %v1122, %v1268
        %v1307 = vadd.f32 %v1123, %v1271
        %v1308 = vadd.f32 %v1124, %v1276
        %v1309 = vadd.f32 %v1125, %v1279
        %v1310 = vadd.f32 %v1126, %v1284
        %v1311 = vadd.f32 %v1127, %v1287
        %v1312 = vadd.f32 %v1128, %v1292
        %v1313 = vadd.f32 %v1129, %v1295
        %v1315 = vshrl.u32 %v249, 16
        %v1317 = vrot.slane %v1315, 4
        %v1318 = vshll.u32 %v249, 16
        %v1320 = vrot.slane %v1318, 5
        %v1321 = vor.u32 %v1317, %v1320
        %v1322 = vrot.slane %v1321, 4
        %v1324 = vshll.u32 %v250, 16
        %v1326 = vrot.slane %v1324, 5
        %v1327 = vsel %vm273, %v1322, %v1326
        %v1328 = vshrl.u32 %v250, 16
        %v1330 = vrot.slane %v1328, 4
        %v1331 = vor.u32 %v1330, %v1326
        %v1332 = vrot.slane %v1331, 4
        %v1334 = vshll.u32 %v251, 16
        %v1336 = vrot.slane %v1334, 5
        %v1337 = vsel %vm273, %v1332, %v1336
        %s1338 = scalar_lea.vmem %s1, 256
        %v1339 = vld [vmem:[%s1338] sm:$0xf]
        %v1340 = vld [vmem:[%s1338 + $0x4] sm:$0xf]
        %v1341 = vld [vmem:[%s1338 + $0x8] sm:$0xf]
        %v1342 = vld [vmem:[%s1338 + $0xc] sm:$0xf]
        %v1343 = vld [vmem:[%s1338 + $0x10] sm:$0xf]
        %v1344 = vld [vmem:[%s1338 + $0x14] sm:$0xf]
        %v1345 = vld [vmem:[%s1338 + $0x18] sm:$0xf]
        %v1346 = vld [vmem:[%s1338 + $0x1c] sm:$0xf]
        %v1347 = vld [vmem:[%s1338 + $0x20] sm:$0xf]
        %v1348 = vld [vmem:[%s1338 + $0x24] sm:$0xf]
        %v1349 = vld [vmem:[%s1338 + $0x28] sm:$0xf]
        %v1350 = vld [vmem:[%s1338 + $0x2c] sm:$0xf]
        %v1351 = vld [vmem:[%s1338 + $0x30] sm:$0xf]
        %v1352 = vld [vmem:[%s1338 + $0x34] sm:$0xf]
        %v1353 = vld [vmem:[%s1338 + $0x38] sm:$0xf]
        %v1354 = vld [vmem:[%s1338 + $0x3c] sm:$0xf]
        %v1355 = vunpack.c.l.b16 %v1327
        %v1356 = vunpack.c.l.b16 %v1337
        %v1357 = vpack.c.b16 %v1356, %v1355
        %v1375 = vunpack.c.l.b16 %v1339
        %v1376 = vunpack.c.l.b16 %v1340
        %v1377 = vunpack.c.l.b16 %v1341
        %v1378 = vunpack.c.l.b16 %v1342
        %v1379 = vunpack.c.l.b16 %v1343
        %v1380 = vunpack.c.l.b16 %v1344
        %v1381 = vunpack.c.l.b16 %v1345
        %v1382 = vunpack.c.l.b16 %v1346
        %v1383 = vunpack.c.l.b16 %v1347
        %v1384 = vunpack.c.l.b16 %v1348
        %v1385 = vunpack.c.l.b16 %v1349
        %v1386 = vunpack.c.l.b16 %v1350
        %v1387 = vunpack.c.l.b16 %v1351
        %v1388 = vunpack.c.l.b16 %v1352
        %v1389 = vunpack.c.l.b16 %v1353
        %v1390 = vunpack.c.l.b16 %v1354
        %v1391 = vpack.c.b16 %v1376, %v1375
        %v1392 = vpack.c.b16 %v1378, %v1377
        %v1393 = vpack.c.b16 %v1380, %v1379
        %v1394 = vpack.c.b16 %v1382, %v1381
        %v1395 = vpack.c.b16 %v1384, %v1383
        %v1396 = vpack.c.b16 %v1386, %v1385
        %v1397 = vpack.c.b16 %v1388, %v1387
        %v1398 = vpack.c.b16 %v1390, %v1389
        %1407 = vmatprep.subr.bf16.mxu0 0
        %1408 = vmatpush1.bf16.msra.mxu0 %v1391
        %1409 = vmatprep.subr.bf16.mxu0 0
        %1410 = vmatpush1.bf16.msra.mxu0 %v1392
        %1411 = vmatprep.subr.bf16.mxu0 0
        %1412 = vmatpush1.bf16.msra.mxu0 %v1393
        %1413 = vmatprep.subr.bf16.mxu0 0
        %1414 = vmatpush1.bf16.msra.mxu0 %v1394
        %1415 = vmatprep.subr.bf16.mxu0 0
        %1416 = vmatpush1.bf16.msra.mxu0 %v1395
        %1417 = vmatprep.subr.bf16.mxu0 0
        %1418 = vmatpush1.bf16.msra.mxu0 %v1396
        %1419 = vmatprep.subr.bf16.mxu0 0
        %1420 = vmatpush1.bf16.msra.mxu0 %v1397
        %1421 = vmatprep.subr.bf16.mxu0 0
        %1422 = vmatpush1.bf16.msra.mxu0 %v1398
        %1423 = vmatprep.subr.bf16.mxu0 0
        %1424 = vmatpush1.bf16.msra.mxu0 0
        %1425 = vmatprep.subr.bf16.mxu0 0
        %1426 = vmatpush1.bf16.msra.mxu0 0
        %1427 = vmatprep.subr.bf16.mxu0 0
        %1428 = vmatpush1.bf16.msra.mxu0 0
        %1429 = vmatprep.subr.bf16.mxu0 0
        %1430 = vmatpush1.bf16.msra.mxu0 0
        %1431 = vmatprep.subr.bf16.mxu0 0
        %1432 = vmatpush1.bf16.msra.mxu0 0
        %1433 = vmatprep.subr.bf16.mxu0 0
        %1434 = vmatpush1.bf16.msra.mxu0 0
        %1435 = vmatprep.subr.bf16.mxu0 0
        %1436 = vmatpush1.bf16.msra.mxu0 0
        %1437 = vmatprep.subr.bf16.mxu0 0
        %1438 = vmatpush1.bf16.msra.mxu0 0
        %1439 = vmatprep.mubr.bf16.mxu0 0
        %1440 = vmatmul.mubr.bf16.gmra.mrb[0].mxu0 %v500
        %v1441 = vpop.f32.mrb[0].mxu0
        %v1442 = vadd.f32 0.0, %v1441
        %v1443 = vpop.f32.mrb[0].mxu0
        %v1444 = vpop.f32.mrb[0].mxu0
        %v1445 = vadd.f32 0.0, %v1444
        %v1446 = vpop.f32.mrb[0].mxu0
        %1447 = vmatprep.mubr.bf16.mxu0 0
        %1448 = vmatmul.mubr.bf16.gmra.mrb[0].mxu0 %v501
        %v1449 = vpop.f32.mrb[0].mxu0
        %v1450 = vadd.f32 0.0, %v1449
        %v1451 = vpop.f32.mrb[0].mxu0
        %v1452 = vpop.f32.mrb[0].mxu0
        %v1453 = vadd.f32 0.0, %v1452
        %v1454 = vpop.f32.mrb[0].mxu0
        %1455 = vmatprep.mubr.bf16.mxu0 0
        %1456 = vmatmul.mubr.bf16.gmra.mrb[0].mxu0 %v502
        %v1457 = vpop.f32.mrb[0].mxu0
        %v1458 = vadd.f32 0.0, %v1457
        %v1459 = vpop.f32.mrb[0].mxu0
        %v1460 = vpop.f32.mrb[0].mxu0
        %v1461 = vadd.f32 0.0, %v1460
        %v1462 = vpop.f32.mrb[0].mxu0
        %1463 = vmatprep.mubr.bf16.mxu0 0
        %1464 = vmatmul.mubr.bf16.gmra.mrb[0].mxu0 %v503
        %v1465 = vpop.f32.mrb[0].mxu0
        %v1466 = vadd.f32 0.0, %v1465
        %v1467 = vpop.f32.mrb[0].mxu0
        %v1468 = vpop.f32.mrb[0].mxu0
        %v1469 = vadd.f32 0.0, %v1468
        %v1470 = vpop.f32.mrb[0].mxu0
        %1471 = vmatprep.mubr.bf16.mxu0 0
        %1472 = vmatmul.mubr.bf16.gmra.mrb[0].mxu0 %v504
        %v1473 = vpop.f32.mrb[0].mxu0
        %v1474 = vadd.f32 0.0, %v1473
        %v1475 = vpop.f32.mrb[0].mxu0
        %v1476 = vpop.f32.mrb[0].mxu0
        %v1477 = vadd.f32 0.0, %v1476
        %v1478 = vpop.f32.mrb[0].mxu0
        %1479 = vmatprep.mubr.bf16.mxu0 0
        %1480 = vmatmul.mubr.bf16.gmra.mrb[0].mxu0 %v505
        %v1481 = vpop.f32.mrb[0].mxu0
        %v1482 = vadd.f32 0.0, %v1481
        %v1483 = vpop.f32.mrb[0].mxu0
        %v1484 = vpop.f32.mrb[0].mxu0
        %v1485 = vadd.f32 0.0, %v1484
        %v1486 = vpop.f32.mrb[0].mxu0
        %1487 = vmatprep.mubr.bf16.mxu0 0
        %1488 = vmatmul.mubr.bf16.gmra.mrb[0].mxu0 %v506
        %v1489 = vpop.f32.mrb[0].mxu0
        %v1490 = vadd.f32 0.0, %v1489
        %v1491 = vpop.f32.mrb[0].mxu0
        %v1492 = vpop.f32.mrb[0].mxu0
        %v1493 = vadd.f32 0.0, %v1492
        %v1494 = vpop.f32.mrb[0].mxu0
        %1495 = vmatprep.mubr.bf16.mxu0 0
        %1496 = vmatmul.mubr.bf16.gmra.mrb[0].mxu0 %v1357
        %v1497 = vpop.f32.mrb[0].mxu0
        %v1498 = vadd.f32 0.0, %v1497
        %v1499 = vpop.f32.mrb[0].mxu0
        %v1500 = vpop.f32.mrb[0].mxu0
        %v1501 = vadd.f32 0.0, %v1500
        %v1502 = vpop.f32.mrb[0].mxu0
        %1503 = vdwg.mxu0
        %v1504 = vadd.f32 %v1298, %v1442
        %v1505 = vadd.f32 %v1299, %v1445
        %v1506 = vadd.f32 %v1300, %v1450
        %v1507 = vadd.f32 %v1301, %v1453
        %v1508 = vadd.f32 %v1302, %v1458
        %v1509 = vadd.f32 %v1303, %v1461
        %v1510 = vadd.f32 %v1304, %v1466
        %v1511 = vadd.f32 %v1305, %v1469
        %v1512 = vadd.f32 %v1306, %v1474
        %v1513 = vadd.f32 %v1307, %v1477
        %v1514 = vadd.f32 %v1308, %v1482
        %v1515 = vadd.f32 %v1309, %v1485
        %v1516 = vadd.f32 %v1310, %v1490
        %v1517 = vadd.f32 %v1311, %v1493
        %v1518 = vadd.f32 %v1312, %v1498
        %v1519 = vadd.f32 %v1313, %v1501
        %v1521 = vrot.slane %v249, 5
        %v1522 = vrot.slane %v1521, 4
        %v1523 = vrot.slane %v250, 5
        %v1524 = vsel %vm863, %v1522, %v1523
        %v1525 = vrot.slane %v1523, 4
        %v1526 = vrot.slane %v251, 5
        %v1527 = vsel %vm863, %v1525, %v1526
        %s1528 = scalar_lea.vmem %s1, 320
        %v1529 = vld [vmem:[%s1528] sm:$0xf]
        %v1530 = vld [vmem:[%s1528 + $0x4] sm:$0xf]
        %v1531 = vld [vmem:[%s1528 + $0x8] sm:$0xf]
        %v1532 = vld [vmem:[%s1528 + $0xc] sm:$0xf]
        %v1533 = vld [vmem:[%s1528 + $0x10] sm:$0xf]
        %v1534 = vld [vmem:[%s1528 + $0x14] sm:$0xf]
        %v1535 = vld [vmem:[%s1528 + $0x18] sm:$0xf]
        %v1536 = vld [vmem:[%s1528 + $0x1c] sm:$0xf]
        %v1537 = vld [vmem:[%s1528 + $0x20] sm:$0xf]
        %v1538 = vld [vmem:[%s1528 + $0x24] sm:$0xf]
        %v1539 = vld [vmem:[%s1528 + $0x28] sm:$0xf]
        %v1540 = vld [vmem:[%s1528 + $0x2c] sm:$0xf]
        %v1541 = vld [vmem:[%s1528 + $0x30] sm:$0xf]
        %v1542 = vld [vmem:[%s1528 + $0x34] sm:$0xf]
        %v1543 = vld [vmem:[%s1528 + $0x38] sm:$0xf]
        %v1544 = vld [vmem:[%s1528 + $0x3c] sm:$0xf]
        %v1545 = vunpack.c.l.b16 %v1524
        %v1546 = vunpack.c.l.b16 %v1527
        %v1547 = vpack.c.b16 %v1546, %v1545
        %v1565 = vunpack.c.l.b16 %v1529
        %v1566 = vunpack.c.l.b16 %v1530
        %v1567 = vunpack.c.l.b16 %v1531
        %v1568 = vunpack.c.l.b16 %v1532
        %v1569 = vunpack.c.l.b16 %v1533
        %v1570 = vunpack.c.l.b16 %v1534
        %v1571 = vunpack.c.l.b16 %v1535
        %v1572 = vunpack.c.l.b16 %v1536
        %v1573 = vunpack.c.l.b16 %v1537
        %v1574 = vunpack.c.l.b16 %v1538
        %v1575 = vunpack.c.l.b16 %v1539
        %v1576 = vunpack.c.l.b16 %v1540
        %v1577 = vunpack.c.l.b16 %v1541
        %v1578 = vunpack.c.l.b16 %v1542
        %v1579 = vunpack.c.l.b16 %v1543
        %v1580 = vunpack.c.l.b16 %v1544
        %v1581 = vpack.c.b16 %v1566, %v1565
        %v1582 = vpack.c.b16 %v1568, %v1567
        %v1583 = vpack.c.b16 %v1570, %v1569
        %v1584 = vpack.c.b16 %v1572, %v1571
        %v1585 = vpack.c.b16 %v1574, %v1573
        %v1586 = vpack.c.b16 %v1576, %v1575
        %v1587 = vpack.c.b16 %v1578, %v1577
        %v1588 = vpack.c.b16 %v1580, %v1579
        %1597 = vmatprep.subr.bf16.mxu0 0
        %1598 = vmatpush1.bf16.msra.mxu0 %v1581
        %1599 = vmatprep.subr.bf16.mxu0 0
        %1600 = vmatpush1.bf16.msra.mxu0 %v1582
        %1601 = vmatprep.subr.bf16.mxu0 0
        %1602 = vmatpush1.bf16.msra.mxu0 %v1583
        %1603 = vmatprep.subr.bf16.mxu0 0
        %1604 = vmatpush1.bf16.msra.mxu0 %v1584
        %1605 = vmatprep.subr.bf16.mxu0 0
        %1606 = vmatpush1.bf16.msra.mxu0 %v1585
        %1607 = vmatprep.subr.bf16.mxu0 0
        %1608 = vmatpush1.bf16.msra.mxu0 %v1586
        %1609 = vmatprep.subr.bf16.mxu0 0
        %1610 = vmatpush1.bf16.msra.mxu0 %v1587
        %1611 = vmatprep.subr.bf16.mxu0 0
        %1612 = vmatpush1.bf16.msra.mxu0 %v1588
        %1613 = vmatprep.subr.bf16.mxu0 0
        %1614 = vmatpush1.bf16.msra.mxu0 0
        %1615 = vmatprep.subr.bf16.mxu0 0
        %1616 = vmatpush1.bf16.msra.mxu0 0
        %1617 = vmatprep.subr.bf16.mxu0 0
        %1618 = vmatpush1.bf16.msra.mxu0 0
        %1619 = vmatprep.subr.bf16.mxu0 0
        %1620 = vmatpush1.bf16.msra.mxu0 0
        %1621 = vmatprep.subr.bf16.mxu0 0
        %1622 = vmatpush1.bf16.msra.mxu0 0
        %1623 = vmatprep.subr.bf16.mxu0 0
        %1624 = vmatpush1.bf16.msra.mxu0 0
        %1625 = vmatprep.subr.bf16.mxu0 0
        %1626 = vmatpush1.bf16.msra.mxu0 0
        %1627 = vmatprep.subr.bf16.mxu0 0
        %1628 = vmatpush1.bf16.msra.mxu0 0
        %1629 = vmatprep.mubr.bf16.mxu0 0
        %1630 = vmatmul.mubr.bf16.gmra.mrb[0].mxu0 %v954
        %v1631 = vpop.f32.mrb[0].mxu0
        %v1632 = vadd.f32 0.0, %v1631
        %v1633 = vpop.f32.mrb[0].mxu0
        %v1634 = vpop.f32.mrb[0].mxu0
        %v1635 = vadd.f32 0.0, %v1634
        %v1636 = vpop.f32.mrb[0].mxu0
        %1637 = vmatprep.mubr.bf16.mxu0 0
        %1638 = vmatmul.mubr.bf16.gmra.mrb[0].mxu0 %v955
        %v1639 = vpop.f32.mrb[0].mxu0
        %v1640 = vadd.f32 0.0, %v1639
        %v1641 = vpop.f32.mrb[0].mxu0
        %v1642 = vpop.f32.mrb[0].mxu0
        %v1643 = vadd.f32 0.0, %v1642
        %v1644 = vpop.f32.mrb[0].mxu0
        %1645 = vmatprep.mubr.bf16.mxu0 0
        %1646 = vmatmul.mubr.bf16.gmra.mrb[0].mxu0 %v956
        %v1647 = vpop.f32.mrb[0].mxu0
        %v1648 = vadd.f32 0.0, %v1647
        %v1649 = vpop.f32.mrb[0].mxu0
        %v1650 = vpop.f32.mrb[0].mxu0
        %v1651 = vadd.f32 0.0, %v1650
        %v1652 = vpop.f32.mrb[0].mxu0
        %1653 = vmatprep.mubr.bf16.mxu0 0
        %1654 = vmatmul.mubr.bf16.gmra.mrb[0].mxu0 %v957
        %v1655 = vpop.f32.mrb[0].mxu0
        %v1656 = vadd.f32 0.0, %v1655
        %v1657 = vpop.f32.mrb[0].mxu0
        %v1658 = vpop.f32.mrb[0].mxu0
        %v1659 = vadd.f32 0.0, %v1658
        %v1660 = vpop.f32.mrb[0].mxu0
        %1661 = vmatprep.mubr.bf16.mxu0 0
        %1662 = vmatmul.mubr.bf16.gmra.mrb[0].mxu0 %v958
        %v1663 = vpop.f32.mrb[0].mxu0
        %v1664 = vadd.f32 0.0, %v1663
        %v1665 = vpop.f32.mrb[0].mxu0
        %v1666 = vpop.f32.mrb[0].mxu0
        %v1667 = vadd.f32 0.0, %v1666
        %v1668 = vpop.f32.mrb[0].mxu0
        %1669 = vmatprep.mubr.bf16.mxu0 0
        %1670 = vmatmul.mubr.bf16.gmra.mrb[0].mxu0 %v959
        %v1671 = vpop.f32.mrb[0].mxu0
        %v1672 = vadd.f32 0.0, %v1671
        %v1673 = vpop.f32.mrb[0].mxu0
        %v1674 = vpop.f32.mrb[0].mxu0
        %v1675 = vadd.f32 0.0, %v1674
        %v1676 = vpop.f32.mrb[0].mxu0
        %1677 = vmatprep.mubr.bf16.mxu0 0
        %1678 = vmatmul.mubr.bf16.gmra.mrb[0].mxu0 %v960
        %v1679 = vpop.f32.mrb[0].mxu0
        %v1680 = vadd.f32 0.0, %v1679
        %v1681 = vpop.f32.mrb[0].mxu0
        %v1682 = vpop.f32.mrb[0].mxu0
        %v1683 = vadd.f32 0.0, %v1682
        %v1684 = vpop.f32.mrb[0].mxu0
        %1685 = vmatprep.mubr.bf16.mxu0 0
        %1686 = vmatmul.mubr.bf16.gmra.mrb[0].mxu0 %v1547
        %v1687 = vpop.f32.mrb[0].mxu0
        %v1688 = vadd.f32 0.0, %v1687
        %v1689 = vpop.f32.mrb[0].mxu0
        %v1690 = vpop.f32.mrb[0].mxu0
        %v1691 = vadd.f32 0.0, %v1690
        %v1692 = vpop.f32.mrb[0].mxu0
        %1693 = vdwg.mxu0
        %v1694 = vadd.f32 %v1504, %v1632
        %v1695 = vadd.f32 %v1505, %v1635
        %v1696 = vadd.f32 %v1506, %v1640
        %v1697 = vadd.f32 %v1507, %v1643
        %v1698 = vadd.f32 %v1508, %v1648
        %v1699 = vadd.f32 %v1509, %v1651
        %v1700 = vadd.f32 %v1510, %v1656
        %v1701 = vadd.f32 %v1511, %v1659
        %v1702 = vadd.f32 %v1512, %v1664
        %v1703 = vadd.f32 %v1513, %v1667
        %v1704 = vadd.f32 %v1514, %v1672
        %v1705 = vadd.f32 %v1515, %v1675
        %v1706 = vadd.f32 %v1516, %v1680
        %v1707 = vadd.f32 %v1517, %v1683
        %v1708 = vadd.f32 %v1518, %v1688
        %v1709 = vadd.f32 %v1519, %v1691
        %s1710 = scalar_lea.vmem %s1, 384
        %v1711 = vld [vmem:[%s1710] sm:$0xf]
        %v1712 = vld [vmem:[%s1710 + $0x4] sm:$0xf]
        %v1713 = vld [vmem:[%s1710 + $0x8] sm:$0xf]
        %v1714 = vld [vmem:[%s1710 + $0xc] sm:$0xf]
        %v1715 = vld [vmem:[%s1710 + $0x10] sm:$0xf]
        %v1716 = vld [vmem:[%s1710 + $0x14] sm:$0xf]
        %v1717 = vld [vmem:[%s1710 + $0x18] sm:$0xf]
        %v1718 = vld [vmem:[%s1710 + $0x1c] sm:$0xf]
        %v1719 = vld [vmem:[%s1710 + $0x20] sm:$0xf]
        %v1720 = vld [vmem:[%s1710 + $0x24] sm:$0xf]
        %v1721 = vld [vmem:[%s1710 + $0x28] sm:$0xf]
        %v1722 = vld [vmem:[%s1710 + $0x2c] sm:$0xf]
        %v1723 = vld [vmem:[%s1710 + $0x30] sm:$0xf]
        %v1724 = vld [vmem:[%s1710 + $0x34] sm:$0xf]
        %v1725 = vld [vmem:[%s1710 + $0x38] sm:$0xf]
        %v1726 = vld [vmem:[%s1710 + $0x3c] sm:$0xf]
        %v1729 = vunpack.c.l.b16 %v252
        %v1730 = vunpack.c.l.b16 %v253
        %v1731 = vpack.c.b16 %v1730, %v1729
        %v1749 = vunpack.c.l.b16 %v1711
        %v1750 = vunpack.c.l.b16 %v1712
        %v1751 = vunpack.c.l.b16 %v1713
        %v1752 = vunpack.c.l.b16 %v1714
        %v1753 = vunpack.c.l.b16 %v1715
        %v1754 = vunpack.c.l.b16 %v1716
        %v1755 = vunpack.c.l.b16 %v1717
        %v1756 = vunpack.c.l.b16 %v1718
        %v1757 = vunpack.c.l.b16 %v1719
        %v1758 = vunpack.c.l.b16 %v1720
        %v1759 = vunpack.c.l.b16 %v1721
        %v1760 = vunpack.c.l.b16 %v1722
        %v1761 = vunpack.c.l.b16 %v1723
        %v1762 = vunpack.c.l.b16 %v1724
        %v1763 = vunpack.c.l.b16 %v1725
        %v1764 = vunpack.c.l.b16 %v1726
        %v1765 = vpack.c.b16 %v1750, %v1749
        %v1766 = vpack.c.b16 %v1752, %v1751
        %v1767 = vpack.c.b16 %v1754, %v1753
        %v1768 = vpack.c.b16 %v1756, %v1755
        %v1769 = vpack.c.b16 %v1758, %v1757
        %v1770 = vpack.c.b16 %v1760, %v1759
        %v1771 = vpack.c.b16 %v1762, %v1761
        %v1772 = vpack.c.b16 %v1764, %v1763
        %1781 = vmatprep.subr.bf16.mxu0 0
        %1782 = vmatpush1.bf16.msra.mxu0 %v1765
        %1783 = vmatprep.subr.bf16.mxu0 0
        %1784 = vmatpush1.bf16.msra.mxu0 %v1766
        %1785 = vmatprep.subr.bf16.mxu0 0
        %1786 = vmatpush1.bf16.msra.mxu0 %v1767
        %1787 = vmatprep.subr.bf16.mxu0 0
        %1788 = vmatpush1.bf16.msra.mxu0 %v1768
        %1789 = vmatprep.subr.bf16.mxu0 0
        %1790 = vmatpush1.bf16.msra.mxu0 %v1769
        %1791 = vmatprep.subr.bf16.mxu0 0
        %1792 = vmatpush1.bf16.msra.mxu0 %v1770
        %1793 = vmatprep.subr.bf16.mxu0 0
        %1794 = vmatpush1.bf16.msra.mxu0 %v1771
        %1795 = vmatprep.subr.bf16.mxu0 0
        %1796 = vmatpush1.bf16.msra.mxu0 %v1772
        %1797 = vmatprep.subr.bf16.mxu0 0
        %1798 = vmatpush1.bf16.msra.mxu0 0
        %1799 = vmatprep.subr.bf16.mxu0 0
        %1800 = vmatpush1.bf16.msra.mxu0 0
        %1801 = vmatprep.subr.bf16.mxu0 0
        %1802 = vmatpush1.bf16.msra.mxu0 0
        %1803 = vmatprep.subr.bf16.mxu0 0
        %1804 = vmatpush1.bf16.msra.mxu0 0
        %1805 = vmatprep.subr.bf16.mxu0 0
        %1806 = vmatpush1.bf16.msra.mxu0 0
        %1807 = vmatprep.subr.bf16.mxu0 0
        %1808 = vmatpush1.bf16.msra.mxu0 0
        %1809 = vmatprep.subr.bf16.mxu0 0
        %1810 = vmatpush1.bf16.msra.mxu0 0
        %1811 = vmatprep.subr.bf16.mxu0 0
        %1812 = vmatpush1.bf16.msra.mxu0 0
        %1813 = vmatprep.mubr.bf16.mxu0 0
        %1814 = vmatmul.mubr.bf16.gmra.mrb[0].mxu0 %v694
        %v1815 = vpop.f32.mrb[0].mxu0
        %v1816 = vadd.f32 0.0, %v1815
        %v1817 = vpop.f32.mrb[0].mxu0
        %v1818 = vpop.f32.mrb[0].mxu0
        %v1819 = vadd.f32 0.0, %v1818
        %v1820 = vpop.f32.mrb[0].mxu0
        %1821 = vmatprep.mubr.bf16.mxu0 0
        %1822 = vmatmul.mubr.bf16.gmra.mrb[0].mxu0 %v695
        %v1823 = vpop.f32.mrb[0].mxu0
        %v1824 = vadd.f32 0.0, %v1823
        %v1825 = vpop.f32.mrb[0].mxu0
        %v1826 = vpop.f32.mrb[0].mxu0
        %v1827 = vadd.f32 0.0, %v1826
        %v1828 = vpop.f32.mrb[0].mxu0
        %1829 = vmatprep.mubr.bf16.mxu0 0
        %1830 = vmatmul.mubr.bf16.gmra.mrb[0].mxu0 %v696
        %v1831 = vpop.f32.mrb[0].mxu0
        %v1832 = vadd.f32 0.0, %v1831
        %v1833 = vpop.f32.mrb[0].mxu0
        %v1834 = vpop.f32.mrb[0].mxu0
        %v1835 = vadd.f32 0.0, %v1834
        %v1836 = vpop.f32.mrb[0].mxu0
        %1837 = vmatprep.mubr.bf16.mxu0 0
        %1838 = vmatmul.mubr.bf16.gmra.mrb[0].mxu0 %v697
        %v1839 = vpop.f32.mrb[0].mxu0
        %v1840 = vadd.f32 0.0, %v1839
        %v1841 = vpop.f32.mrb[0].mxu0
        %v1842 = vpop.f32.mrb[0].mxu0
        %v1843 = vadd.f32 0.0, %v1842
        %v1844 = vpop.f32.mrb[0].mxu0
        %1845 = vmatprep.mubr.bf16.mxu0 0
        %1846 = vmatmul.mubr.bf16.gmra.mrb[0].mxu0 %v698
        %v1847 = vpop.f32.mrb[0].mxu0
        %v1848 = vadd.f32 0.0, %v1847
        %v1849 = vpop.f32.mrb[0].mxu0
        %v1850 = vpop.f32.mrb[0].mxu0
        %v1851 = vadd.f32 0.0, %v1850
        %v1852 = vpop.f32.mrb[0].mxu0
        %1853 = vmatprep.mubr.bf16.mxu0 0
        %1854 = vmatmul.mubr.bf16.gmra.mrb[0].mxu0 %v699
        %v1855 = vpop.f32.mrb[0].mxu0
        %v1856 = vadd.f32 0.0, %v1855
        %v1857 = vpop.f32.mrb[0].mxu0
        %v1858 = vpop.f32.mrb[0].mxu0
        %v1859 = vadd.f32 0.0, %v1858
        %v1860 = vpop.f32.mrb[0].mxu0
        %1861 = vmatprep.mubr.bf16.mxu0 0
        %1862 = vmatmul.mubr.bf16.gmra.mrb[0].mxu0 %v1151
        %v1863 = vpop.f32.mrb[0].mxu0
        %v1864 = vadd.f32 0.0, %v1863
        %v1865 = vpop.f32.mrb[0].mxu0
        %v1866 = vpop.f32.mrb[0].mxu0
        %v1867 = vadd.f32 0.0, %v1866
        %v1868 = vpop.f32.mrb[0].mxu0
        %1869 = vmatprep.mubr.bf16.mxu0 0
        %1870 = vmatmul.mubr.bf16.gmra.mrb[0].mxu0 %v1731
        %v1871 = vpop.f32.mrb[0].mxu0
        %v1872 = vadd.f32 0.0, %v1871
        %v1873 = vpop.f32.mrb[0].mxu0
        %v1874 = vpop.f32.mrb[0].mxu0
        %v1875 = vadd.f32 0.0, %v1874
        %v1876 = vpop.f32.mrb[0].mxu0
        %1877 = vdwg.mxu0
        %v1878 = vadd.f32 %v1694, %v1816
        %v1879 = vadd.f32 %v1695, %v1819
        %v1880 = vadd.f32 %v1696, %v1824
        %v1881 = vadd.f32 %v1697, %v1827
        %v1882 = vadd.f32 %v1698, %v1832
        %v1883 = vadd.f32 %v1699, %v1835
        %v1884 = vadd.f32 %v1700, %v1840
        %v1885 = vadd.f32 %v1701, %v1843
        %v1886 = vadd.f32 %v1702, %v1848
        %v1887 = vadd.f32 %v1703, %v1851
        %v1888 = vadd.f32 %v1704, %v1856
        %v1889 = vadd.f32 %v1705, %v1859
        %v1890 = vadd.f32 %v1706, %v1864
        %v1891 = vadd.f32 %v1707, %v1867
        %v1892 = vadd.f32 %v1708, %v1872
        %v1893 = vadd.f32 %v1709, %v1875
        %v1895 = vshrl.u32 %v252, 16
        %v1897 = vrot.slane %v1895, 4
        %v1898 = vshll.u32 %v252, 16
        %v1900 = vrot.slane %v1898, 5
        %v1901 = vor.u32 %v1897, %v1900
        %v1902 = vrot.slane %v1901, 4
        %v1904 = vshll.u32 %v253, 16
        %v1906 = vrot.slane %v1904, 5
        %v1907 = vsel %vm273, %v1902, %v1906
        %v1908 = vshrl.u32 %v253, 16
        %v1910 = vrot.slane %v1908, 4
        %v1911 = vor.u32 %v1910, %v1906
        %v1912 = vrot.slane %v1911, 4
        %v1914 = vshll.u32 %v254, 16
        %v1916 = vrot.slane %v1914, 5
        %v1917 = vsel %vm273, %v1912, %v1916
        %s1918 = scalar_lea.vmem %s1, 448
        %v1919 = vld [vmem:[%s1918] sm:$0xf]
        %v1920 = vld [vmem:[%s1918 + $0x4] sm:$0xf]
        %v1921 = vld [vmem:[%s1918 + $0x8] sm:$0xf]
        %v1922 = vld [vmem:[%s1918 + $0xc] sm:$0xf]
        %v1923 = vld [vmem:[%s1918 + $0x10] sm:$0xf]
        %v1924 = vld [vmem:[%s1918 + $0x14] sm:$0xf]
        %v1925 = vld [vmem:[%s1918 + $0x18] sm:$0xf]
        %v1926 = vld [vmem:[%s1918 + $0x1c] sm:$0xf]
        %v1927 = vld [vmem:[%s1918 + $0x20] sm:$0xf]
        %v1928 = vld [vmem:[%s1918 + $0x24] sm:$0xf]
        %v1929 = vld [vmem:[%s1918 + $0x28] sm:$0xf]
        %v1930 = vld [vmem:[%s1918 + $0x2c] sm:$0xf]
        %v1931 = vld [vmem:[%s1918 + $0x30] sm:$0xf]
        %v1932 = vld [vmem:[%s1918 + $0x34] sm:$0xf]
        %v1933 = vld [vmem:[%s1918 + $0x38] sm:$0xf]
        %v1934 = vld [vmem:[%s1918 + $0x3c] sm:$0xf]
        %v1935 = vunpack.c.l.b16 %v1907
        %v1936 = vunpack.c.l.b16 %v1917
        %v1937 = vpack.c.b16 %v1936, %v1935
        %v1955 = vunpack.c.l.b16 %v1919
        %v1956 = vunpack.c.l.b16 %v1920
        %v1957 = vunpack.c.l.b16 %v1921
        %v1958 = vunpack.c.l.b16 %v1922
        %v1959 = vunpack.c.l.b16 %v1923
        %v1960 = vunpack.c.l.b16 %v1924
        %v1961 = vunpack.c.l.b16 %v1925
        %v1962 = vunpack.c.l.b16 %v1926
        %v1963 = vunpack.c.l.b16 %v1927
        %v1964 = vunpack.c.l.b16 %v1928
        %v1965 = vunpack.c.l.b16 %v1929
        %v1966 = vunpack.c.l.b16 %v1930
        %v1967 = vunpack.c.l.b16 %v1931
        %v1968 = vunpack.c.l.b16 %v1932
        %v1969 = vunpack.c.l.b16 %v1933
        %v1970 = vunpack.c.l.b16 %v1934
        %v1971 = vpack.c.b16 %v1956, %v1955
        %v1972 = vpack.c.b16 %v1958, %v1957
        %v1973 = vpack.c.b16 %v1960, %v1959
        %v1974 = vpack.c.b16 %v1962, %v1961
        %v1975 = vpack.c.b16 %v1964, %v1963
        %v1976 = vpack.c.b16 %v1966, %v1965
        %v1977 = vpack.c.b16 %v1968, %v1967
        %v1978 = vpack.c.b16 %v1970, %v1969
        %1987 = vmatprep.subr.bf16.mxu0 0
        %1988 = vmatpush1.bf16.msra.mxu0 %v1971
        %1989 = vmatprep.subr.bf16.mxu0 0
        %1990 = vmatpush1.bf16.msra.mxu0 %v1972
        %1991 = vmatprep.subr.bf16.mxu0 0
        %1992 = vmatpush1.bf16.msra.mxu0 %v1973
        %1993 = vmatprep.subr.bf16.mxu0 0
        %1994 = vmatpush1.bf16.msra.mxu0 %v1974
        %1995 = vmatprep.subr.bf16.mxu0 0
        %1996 = vmatpush1.bf16.msra.mxu0 %v1975
        %1997 = vmatprep.subr.bf16.mxu0 0
        %1998 = vmatpush1.bf16.msra.mxu0 %v1976
        %1999 = vmatprep.subr.bf16.mxu0 0
        %2000 = vmatpush1.bf16.msra.mxu0 %v1977
        %2001 = vmatprep.subr.bf16.mxu0 0
        %2002 = vmatpush1.bf16.msra.mxu0 %v1978
        %2003 = vmatprep.subr.bf16.mxu0 0
        %2004 = vmatpush1.bf16.msra.mxu0 0
        %2005 = vmatprep.subr.bf16.mxu0 0
        %2006 = vmatpush1.bf16.msra.mxu0 0
        %2007 = vmatprep.subr.bf16.mxu0 0
        %2008 = vmatpush1.bf16.msra.mxu0 0
        %2009 = vmatprep.subr.bf16.mxu0 0
        %2010 = vmatpush1.bf16.msra.mxu0 0
        %2011 = vmatprep.subr.bf16.mxu0 0
        %2012 = vmatpush1.bf16.msra.mxu0 0
        %2013 = vmatprep.subr.bf16.mxu0 0
        %2014 = vmatpush1.bf16.msra.mxu0 0
        %2015 = vmatprep.subr.bf16.mxu0 0
        %2016 = vmatpush1.bf16.msra.mxu0 0
        %2017 = vmatprep.subr.bf16.mxu0 0
        %2018 = vmatpush1.bf16.msra.mxu0 0
        %2019 = vmatprep.mubr.bf16.mxu0 0
        %2020 = vmatmul.mubr.bf16.gmra.mrb[0].mxu0 %v501
        %v2021 = vpop.f32.mrb[0].mxu0
        %v2022 = vadd.f32 0.0, %v2021
        %v2023 = vpop.f32.mrb[0].mxu0
        %v2024 = vpop.f32.mrb[0].mxu0
        %v2025 = vadd.f32 0.0, %v2024
        %v2026 = vpop.f32.mrb[0].mxu0
        %2027 = vmatprep.mubr.bf16.mxu0 0
        %2028 = vmatmul.mubr.bf16.gmra.mrb[0].mxu0 %v502
        %v2029 = vpop.f32.mrb[0].mxu0
        %v2030 = vadd.f32 0.0, %v2029
        %v2031 = vpop.f32.mrb[0].mxu0
        %v2032 = vpop.f32.mrb[0].mxu0
        %v2033 = vadd.f32 0.0, %v2032
        %v2034 = vpop.f32.mrb[0].mxu0
        %2035 = vmatprep.mubr.bf16.mxu0 0
        %2036 = vmatmul.mubr.bf16.gmra.mrb[0].mxu0 %v503
        %v2037 = vpop.f32.mrb[0].mxu0
        %v2038 = vadd.f32 0.0, %v2037
        %v2039 = vpop.f32.mrb[0].mxu0
        %v2040 = vpop.f32.mrb[0].mxu0
        %v2041 = vadd.f32 0.0, %v2040
        %v2042 = vpop.f32.mrb[0].mxu0
        %2043 = vmatprep.mubr.bf16.mxu0 0
        %2044 = vmatmul.mubr.bf16.gmra.mrb[0].mxu0 %v504
        %v2045 = vpop.f32.mrb[0].mxu0
        %v2046 = vadd.f32 0.0, %v2045
        %v2047 = vpop.f32.mrb[0].mxu0
        %v2048 = vpop.f32.mrb[0].mxu0
        %v2049 = vadd.f32 0.0, %v2048
        %v2050 = vpop.f32.mrb[0].mxu0
        %2051 = vmatprep.mubr.bf16.mxu0 0
        %2052 = vmatmul.mubr.bf16.gmra.mrb[0].mxu0 %v505
        %v2053 = vpop.f32.mrb[0].mxu0
        %v2054 = vadd.f32 0.0, %v2053
        %v2055 = vpop.f32.mrb[0].mxu0
        %v2056 = vpop.f32.mrb[0].mxu0
        %v2057 = vadd.f32 0.0, %v2056
        %v2058 = vpop.f32.mrb[0].mxu0
        %2059 = vmatprep.mubr.bf16.mxu0 0
        %2060 = vmatmul.mubr.bf16.gmra.mrb[0].mxu0 %v506
        %v2061 = vpop.f32.mrb[0].mxu0
        %v2062 = vadd.f32 0.0, %v2061
        %v2063 = vpop.f32.mrb[0].mxu0
        %v2064 = vpop.f32.mrb[0].mxu0
        %v2065 = vadd.f32 0.0, %v2064
        %v2066 = vpop.f32.mrb[0].mxu0
        %2067 = vmatprep.mubr.bf16.mxu0 0
        %2068 = vmatmul.mubr.bf16.gmra.mrb[0].mxu0 %v1357
        %v2069 = vpop.f32.mrb[0].mxu0
        %v2070 = vadd.f32 0.0, %v2069
        %v2071 = vpop.f32.mrb[0].mxu0
        %v2072 = vpop.f32.mrb[0].mxu0
        %v2073 = vadd.f32 0.0, %v2072
        %v2074 = vpop.f32.mrb[0].mxu0
        %2075 = vmatprep.mubr.bf16.mxu0 0
        %2076 = vmatmul.mubr.bf16.gmra.mrb[0].mxu0 %v1937
        %v2077 = vpop.f32.mrb[0].mxu0
        %v2078 = vadd.f32 0.0, %v2077
        %v2079 = vpop.f32.mrb[0].mxu0
        %v2080 = vpop.f32.mrb[0].mxu0
        %v2081 = vadd.f32 0.0, %v2080
        %v2082 = vpop.f32.mrb[0].mxu0
        %2083 = vdwg.mxu0
        %v2084 = vadd.f32 %v1878, %v2022
        %v2085 = vadd.f32 %v1879, %v2025
        %v2086 = vadd.f32 %v1880, %v2030
        %v2087 = vadd.f32 %v1881, %v2033
        %v2088 = vadd.f32 %v1882, %v2038
        %v2089 = vadd.f32 %v1883, %v2041
        %v2090 = vadd.f32 %v1884, %v2046
        %v2091 = vadd.f32 %v1885, %v2049
        %v2092 = vadd.f32 %v1886, %v2054
        %v2093 = vadd.f32 %v1887, %v2057
        %v2094 = vadd.f32 %v1888, %v2062
        %v2095 = vadd.f32 %v1889, %v2065
        %v2096 = vadd.f32 %v1890, %v2070
        %v2097 = vadd.f32 %v1891, %v2073
        %v2098 = vadd.f32 %v1892, %v2078
        %v2099 = vadd.f32 %v1893, %v2081
        %v2101 = vrot.slane %v252, 5
        %v2102 = vrot.slane %v2101, 4
        %v2103 = vrot.slane %v253, 5
        %v2104 = vsel %vm863, %v2102, %v2103
        %v2105 = vrot.slane %v2103, 4
        %v2106 = vrot.slane %v254, 5
        %v2107 = vsel %vm863, %v2105, %v2106
        %s2108 = scalar_lea.vmem %s1, 512
        %v2109 = vld [vmem:[%s2108] sm:$0xf]
        %v2110 = vld [vmem:[%s2108 + $0x4] sm:$0xf]
        %v2111 = vld [vmem:[%s2108 + $0x8] sm:$0xf]
        %v2112 = vld [vmem:[%s2108 + $0xc] sm:$0xf]
        %v2113 = vld [vmem:[%s2108 + $0x10] sm:$0xf]
        %v2114 = vld [vmem:[%s2108 + $0x14] sm:$0xf]
        %v2115 = vld [vmem:[%s2108 + $0x18] sm:$0xf]
        %v2116 = vld [vmem:[%s2108 + $0x1c] sm:$0xf]
        %v2117 = vld [vmem:[%s2108 + $0x20] sm:$0xf]
        %v2118 = vld [vmem:[%s2108 + $0x24] sm:$0xf]
        %v2119 = vld [vmem:[%s2108 + $0x28] sm:$0xf]
        %v2120 = vld [vmem:[%s2108 + $0x2c] sm:$0xf]
        %v2121 = vld [vmem:[%s2108 + $0x30] sm:$0xf]
        %v2122 = vld [vmem:[%s2108 + $0x34] sm:$0xf]
        %v2123 = vld [vmem:[%s2108 + $0x38] sm:$0xf]
        %v2124 = vld [vmem:[%s2108 + $0x3c] sm:$0xf]
        %v2125 = vunpack.c.l.b16 %v2104
        %v2126 = vunpack.c.l.b16 %v2107
        %v2127 = vpack.c.b16 %v2126, %v2125
        %v2145 = vunpack.c.l.b16 %v2109
        %v2146 = vunpack.c.l.b16 %v2110
        %v2147 = vunpack.c.l.b16 %v2111
        %v2148 = vunpack.c.l.b16 %v2112
        %v2149 = vunpack.c.l.b16 %v2113
        %v2150 = vunpack.c.l.b16 %v2114
        %v2151 = vunpack.c.l.b16 %v2115
        %v2152 = vunpack.c.l.b16 %v2116
        %v2153 = vunpack.c.l.b16 %v2117
        %v2154 = vunpack.c.l.b16 %v2118
        %v2155 = vunpack.c.l.b16 %v2119
        %v2156 = vunpack.c.l.b16 %v2120
        %v2157 = vunpack.c.l.b16 %v2121
        %v2158 = vunpack.c.l.b16 %v2122
        %v2159 = vunpack.c.l.b16 %v2123
        %v2160 = vunpack.c.l.b16 %v2124
        %v2161 = vpack.c.b16 %v2146, %v2145
        %v2162 = vpack.c.b16 %v2148, %v2147
        %v2163 = vpack.c.b16 %v2150, %v2149
        %v2164 = vpack.c.b16 %v2152, %v2151
        %v2165 = vpack.c.b16 %v2154, %v2153
        %v2166 = vpack.c.b16 %v2156, %v2155
        %v2167 = vpack.c.b16 %v2158, %v2157
        %v2168 = vpack.c.b16 %v2160, %v2159
        %2177 = vmatprep.subr.bf16.mxu0 0
        %2178 = vmatpush1.bf16.msra.mxu0 %v2161
        %2179 = vmatprep.subr.bf16.mxu0 0
        %2180 = vmatpush1.bf16.msra.mxu0 %v2162
        %2181 = vmatprep.subr.bf16.mxu0 0
        %2182 = vmatpush1.bf16.msra.mxu0 %v2163
        %2183 = vmatprep.subr.bf16.mxu0 0
        %2184 = vmatpush1.bf16.msra.mxu0 %v2164
        %2185 = vmatprep.subr.bf16.mxu0 0
        %2186 = vmatpush1.bf16.msra.mxu0 %v2165
        %2187 = vmatprep.subr.bf16.mxu0 0
        %2188 = vmatpush1.bf16.msra.mxu0 %v2166
        %2189 = vmatprep.subr.bf16.mxu0 0
        %2190 = vmatpush1.bf16.msra.mxu0 %v2167
        %2191 = vmatprep.subr.bf16.mxu0 0
        %2192 = vmatpush1.bf16.msra.mxu0 %v2168
        %2193 = vmatprep.subr.bf16.mxu0 0
        %2194 = vmatpush1.bf16.msra.mxu0 0
        %2195 = vmatprep.subr.bf16.mxu0 0
        %2196 = vmatpush1.bf16.msra.mxu0 0
        %2197 = vmatprep.subr.bf16.mxu0 0
        %2198 = vmatpush1.bf16.msra.mxu0 0
        %2199 = vmatprep.subr.bf16.mxu0 0
        %2200 = vmatpush1.bf16.msra.mxu0 0
        %2201 = vmatprep.subr.bf16.mxu0 0
        %2202 = vmatpush1.bf16.msra.mxu0 0
        %2203 = vmatprep.subr.bf16.mxu0 0
        %2204 = vmatpush1.bf16.msra.mxu0 0
        %2205 = vmatprep.subr.bf16.mxu0 0
        %2206 = vmatpush1.bf16.msra.mxu0 0
        %2207 = vmatprep.subr.bf16.mxu0 0
        %2208 = vmatpush1.bf16.msra.mxu0 0
        %2209 = vmatprep.mubr.bf16.mxu0 0
        %2210 = vmatmul.mubr.bf16.gmra.mrb[0].mxu0 %v955
        %v2211 = vpop.f32.mrb[0].mxu0
        %v2212 = vadd.f32 0.0, %v2211
        %v2213 = vpop.f32.mrb[0].mxu0
        %v2214 = vpop.f32.mrb[0].mxu0
        %v2215 = vadd.f32 0.0, %v2214
        %v2216 = vpop.f32.mrb[0].mxu0
        %2217 = vmatprep.mubr.bf16.mxu0 0
        %2218 = vmatmul.mubr.bf16.gmra.mrb[0].mxu0 %v956
        %v2219 = vpop.f32.mrb[0].mxu0
        %v2220 = vadd.f32 0.0, %v2219
        %v2221 = vpop.f32.mrb[0].mxu0
        %v2222 = vpop.f32.mrb[0].mxu0
        %v2223 = vadd.f32 0.0, %v2222
        %v2224 = vpop.f32.mrb[0].mxu0
        %2225 = vmatprep.mubr.bf16.mxu0 0
        %2226 = vmatmul.mubr.bf16.gmra.mrb[0].mxu0 %v957
        %v2227 = vpop.f32.mrb[0].mxu0
        %v2228 = vadd.f32 0.0, %v2227
        %v2229 = vpop.f32.mrb[0].mxu0
        %v2230 = vpop.f32.mrb[0].mxu0
        %v2231 = vadd.f32 0.0, %v2230
        %v2232 = vpop.f32.mrb[0].mxu0
        %2233 = vmatprep.mubr.bf16.mxu0 0
        %2234 = vmatmul.mubr.bf16.gmra.mrb[0].mxu0 %v958
        %v2235 = vpop.f32.mrb[0].mxu0
        %v2236 = vadd.f32 0.0, %v2235
        %v2237 = vpop.f32.mrb[0].mxu0
        %v2238 = vpop.f32.mrb[0].mxu0
        %v2239 = vadd.f32 0.0, %v2238
        %v2240 = vpop.f32.mrb[0].mxu0
        %2241 = vmatprep.mubr.bf16.mxu0 0
        %2242 = vmatmul.mubr.bf16.gmra.mrb[0].mxu0 %v959
        %v2243 = vpop.f32.mrb[0].mxu0
        %v2244 = vadd.f32 0.0, %v2243
        %v2245 = vpop.f32.mrb[0].mxu0
        %v2246 = vpop.f32.mrb[0].mxu0
        %v2247 = vadd.f32 0.0, %v2246
        %v2248 = vpop.f32.mrb[0].mxu0
        %2249 = vmatprep.mubr.bf16.mxu0 0
        %2250 = vmatmul.mubr.bf16.gmra.mrb[0].mxu0 %v960
        %v2251 = vpop.f32.mrb[0].mxu0
        %v2252 = vadd.f32 0.0, %v2251
        %v2253 = vpop.f32.mrb[0].mxu0
        %v2254 = vpop.f32.mrb[0].mxu0
        %v2255 = vadd.f32 0.0, %v2254
        %v2256 = vpop.f32.mrb[0].mxu0
        %2257 = vmatprep.mubr.bf16.mxu0 0
        %2258 = vmatmul.mubr.bf16.gmra.mrb[0].mxu0 %v1547
        %v2259 = vpop.f32.mrb[0].mxu0
        %v2260 = vadd.f32 0.0, %v2259
        %v2261 = vpop.f32.mrb[0].mxu0
        %v2262 = vpop.f32.mrb[0].mxu0
        %v2263 = vadd.f32 0.0, %v2262
        %v2264 = vpop.f32.mrb[0].mxu0
        %2265 = vmatprep.mubr.bf16.mxu0 0
        %2266 = vmatmul.mubr.bf16.gmra.mrb[0].mxu0 %v2127
        %v2267 = vpop.f32.mrb[0].mxu0
        %v2268 = vadd.f32 0.0, %v2267
        %v2269 = vpop.f32.mrb[0].mxu0
        %v2270 = vpop.f32.mrb[0].mxu0
        %v2271 = vadd.f32 0.0, %v2270
        %v2272 = vpop.f32.mrb[0].mxu0
        %2273 = vdwg.mxu0
        %v2274 = vadd.f32 %v2084, %v2212
        %v2275 = vadd.f32 %v2085, %v2215
        %v2276 = vadd.f32 %v2086, %v2220
        %v2277 = vadd.f32 %v2087, %v2223
        %v2278 = vadd.f32 %v2088, %v2228
        %v2279 = vadd.f32 %v2089, %v2231
        %v2280 = vadd.f32 %v2090, %v2236
        %v2281 = vadd.f32 %v2091, %v2239
        %v2282 = vadd.f32 %v2092, %v2244
        %v2283 = vadd.f32 %v2093, %v2247
        %v2284 = vadd.f32 %v2094, %v2252
        %v2285 = vadd.f32 %v2095, %v2255
        %v2286 = vadd.f32 %v2096, %v2260
        %v2287 = vadd.f32 %v2097, %v2263
        %v2288 = vadd.f32 %v2098, %v2268
        %v2289 = vadd.f32 %v2099, %v2271
        %v2290 = vld [vmem:[%s2] sm:$0x1]
        %v2292 = vlaneseq
        %v2293 = vshrl.u32 %v2292, 7
        %v2294 = vsub.s32 0, %v2293
        %v2295 = vrot.slane %v2290, %v2294
        %v2297 = vmul.f32 %v2274, %v2295
        %v2298 = vmul.f32 %v2275, %v2295
        %v2299 = vmul.f32 %v2276, %v2295
        %v2300 = vmul.f32 %v2277, %v2295
        %v2301 = vmul.f32 %v2278, %v2295
        %v2302 = vmul.f32 %v2279, %v2295
        %v2303 = vmul.f32 %v2280, %v2295
        %v2304 = vmul.f32 %v2281, %v2295
        %v2305 = vmul.f32 %v2282, %v2295
        %v2306 = vmul.f32 %v2283, %v2295
        %v2307 = vmul.f32 %v2284, %v2295
        %v2308 = vmul.f32 %v2285, %v2295
        %v2309 = vmul.f32 %v2286, %v2295
        %v2310 = vmul.f32 %v2287, %v2295
        %v2311 = vmul.f32 %v2288, %v2295
        %v2312 = vmul.f32 %v2289, %v2295
        %v2313 = vld [vmem:[%s3] sm:$0x1]
        %v2315 = vlaneseq
        %v2316 = vshrl.u32 %v2315, 7
        %v2317 = vsub.s32 0, %v2316
        %v2318 = vrot.slane %v2313, %v2317
        %v2320 = vadd.f32 %v2297, %v2318
        %v2321 = vadd.f32 %v2298, %v2318
        %v2322 = vadd.f32 %v2299, %v2318
        %v2323 = vadd.f32 %v2300, %v2318
        %v2324 = vadd.f32 %v2301, %v2318
        %v2325 = vadd.f32 %v2302, %v2318
        %v2326 = vadd.f32 %v2303, %v2318
        %v2327 = vadd.f32 %v2304, %v2318
        %v2328 = vadd.f32 %v2305, %v2318
        %v2329 = vadd.f32 %v2306, %v2318
        %v2330 = vadd.f32 %v2307, %v2318
        %v2331 = vadd.f32 %v2308, %v2318
        %v2332 = vadd.f32 %v2309, %v2318
        %v2333 = vadd.f32 %v2310, %v2318
        %v2334 = vadd.f32 %v2311, %v2318
        %v2335 = vadd.f32 %v2312, %v2318
        %v2336 = vmax.f32 %v2320, 0.0
        %v2337 = vmax.f32 %v2321, 0.0
        %v2338 = vmax.f32 %v2322, 0.0
        %v2339 = vmax.f32 %v2323, 0.0
        %v2340 = vmax.f32 %v2324, 0.0
        %v2341 = vmax.f32 %v2325, 0.0
        %v2342 = vmax.f32 %v2326, 0.0
        %v2343 = vmax.f32 %v2327, 0.0
        %v2344 = vmax.f32 %v2328, 0.0
        %v2345 = vmax.f32 %v2329, 0.0
        %v2346 = vmax.f32 %v2330, 0.0
        %v2347 = vmax.f32 %v2331, 0.0
        %v2348 = vmax.f32 %v2332, 0.0
        %v2349 = vmax.f32 %v2333, 0.0
        %v2350 = vmax.f32 %v2334, 0.0
        %v2351 = vmax.f32 %v2335, 0.0
        %v2352 = vpack.c.bf16 %v2337, %v2336
        %v2353 = vpack.c.bf16 %v2339, %v2338
        %v2354 = vpack.c.bf16 %v2341, %v2340
        %v2355 = vpack.c.bf16 %v2343, %v2342
        %v2356 = vpack.c.bf16 %v2345, %v2344
        %v2357 = vpack.c.bf16 %v2347, %v2346
        %v2358 = vpack.c.bf16 %v2349, %v2348
        %v2359 = vpack.c.bf16 %v2351, %v2350
        %v2368 = vunpack.c.l.b16 %v2352
        %v2369 = vunpack.c.h.b16 %v2352
        %v2370 = vunpack.c.l.b16 %v2353
        %v2371 = vunpack.c.h.b16 %v2353
        %v2372 = vunpack.c.l.b16 %v2354
        %v2373 = vunpack.c.h.b16 %v2354
        %v2374 = vunpack.c.l.b16 %v2355
        %v2375 = vunpack.c.h.b16 %v2355
        %v2376 = vunpack.c.l.b16 %v2356
        %v2377 = vunpack.c.h.b16 %v2356
        %v2378 = vunpack.c.l.b16 %v2357
        %v2379 = vunpack.c.h.b16 %v2357
        %v2380 = vunpack.c.l.b16 %v2358
        %v2381 = vunpack.c.h.b16 %v2358
        %v2382 = vunpack.c.l.b16 %v2359
        %v2383 = vunpack.c.h.b16 %v2359
        %v2384 = vpack.c.b16 %v2368, %v2368
        %v2385 = vpack.c.b16 %v2369, %v2369
        %v2386 = vpack.c.b16 %v2370, %v2370
        %v2387 = vpack.c.b16 %v2371, %v2371
        %v2388 = vpack.c.b16 %v2372, %v2372
        %v2389 = vpack.c.b16 %v2373, %v2373
        %v2390 = vpack.c.b16 %v2374, %v2374
        %v2391 = vpack.c.b16 %v2375, %v2375
        %v2392 = vpack.c.b16 %v2376, %v2376
        %v2393 = vpack.c.b16 %v2377, %v2377
        %v2394 = vpack.c.b16 %v2378, %v2378
        %v2395 = vpack.c.b16 %v2379, %v2379
        %v2396 = vpack.c.b16 %v2380, %v2380
        %v2397 = vpack.c.b16 %v2381, %v2381
        %v2398 = vpack.c.b16 %v2382, %v2382
        %v2399 = vpack.c.b16 %v2383, %v2383
        %2416 = vst [vmem:[%s214] sm:$0xf] %v2384
        %2417 = vst [vmem:[%s214 + $0x4] sm:$0xf] %v2385
        %2418 = vst [vmem:[%s214 + $0x8] sm:$0xf] %v2386
        %2419 = vst [vmem:[%s214 + $0xc] sm:$0xf] %v2387
        %2420 = vst [vmem:[%s214 + $0x10] sm:$0xf] %v2388
        %2421 = vst [vmem:[%s214 + $0x14] sm:$0xf] %v2389
        %2422 = vst [vmem:[%s214 + $0x18] sm:$0xf] %v2390
        %2423 = vst [vmem:[%s214 + $0x1c] sm:$0xf] %v2391
        %2424 = vst [vmem:[%s214 + $0x20] sm:$0xf] %v2392
        %2425 = vst [vmem:[%s214 + $0x24] sm:$0xf] %v2393
        %2426 = vst [vmem:[%s214 + $0x28] sm:$0xf] %v2394
        %2427 = vst [vmem:[%s214 + $0x2c] sm:$0xf] %v2395
        %2428 = vst [vmem:[%s214 + $0x30] sm:$0xf] %v2396
        %2429 = vst [vmem:[%s214 + $0x34] sm:$0xf] %v2397
        %2430 = vst [vmem:[%s214 + $0x38] sm:$0xf] %v2398
        %2431 = vst [vmem:[%s214 + $0x3c] sm:$0xf] %v2399
        %s2432 = sand.u32 %s131, 1
        %s2433 = scalar_lea.sflag [#allocation3], %s2432
        %s2434 = sand.u32 %s131, 1
        %s2435 = smul.addr %s2434, 64
        %s2436 = scalar_lea.vmem [#allocation2], %s2435
        // Predicated region
        $region37: #{tpu_custom_call.1} parent=35 // pred_check
          %p2437 = pneg %p141
        $region38: #{tpu_custom_call.1} parent=35 // pred_check_branch
          %2439 = sbr.rel (%p2437) target = $region40
        $region39: #{tpu_custom_call.1} parent=35 // pred_region
          %s2441 = ssub.s32 1024, 1024
          %2442 = vsyncadd %s2433, %s2441
          %s2443 = smul.addr %s23, 16
          %s2444 = smul.addr %s22, 32
          %s2445 = sadd.s32 %s2443, %s2444
          %s2446 = smul.addr %s2445, 64
          %s2447 = scalar_lea.hbm %s4, %s2446
          %s2448 = sshll.u32 %s2436, 4
          %s2449 = int_to_ptr.vmem [resolvable:$true] %s2448
          %2454 = dma.vmem_to_hbm [thread:$0]  %s2449, 1024, %s2447, %s2433, 64, 64, 4
        $region40: #{tpu_custom_call.1} parent=35 // pred_fallthru
          _
      $region36: #{tpu_custom_call.1} parent=5 // pred_fallthru
        _
      %p2455 = scmp.le.s32.totalorder 2, %s13
      // Predicated region
      $region41: #{tpu_custom_call.1} parent=5 // pred_check
        %p2456 = pneg %p2455
      $region42: #{tpu_custom_call.1} parent=5 // pred_check_branch
        %2458 = sbr.rel (%p2456) target = $region44
      $region43: #{tpu_custom_call.1} parent=5 // pred_region
        %s2459 = ssub.s32 %s13, 2
        // Predicated region
        $region45: #{tpu_custom_call.1} parent=43 // pred_check
          %p2460 = pneg %p147
        $region46: #{tpu_custom_call.1} parent=43 // pred_check_branch
          %2462 = sbr.rel (%p2460) target = $region48
        $region47: #{tpu_custom_call.1} parent=43 // pred_region
          %s2463 = sand.u32 %s132, 1
          %s2464 = scalar_lea.sflag [#allocation3], %s2463
          %s2465 = sand.u32 %s132, 1
          %s2466 = smul.addr %s2465, 64
          %s2467 = scalar_lea.vmem [#allocation2], %s2466
          %2468 = dma.done %s2464, 1024
        $region48: #{tpu_custom_call.1} parent=43 // pred_fallthru
          _
      $region44: #{tpu_custom_call.1} parent=5 // pred_fallthru
        _
    $region6: #{tpu_custom_call.1} parent=1 // loop_footer
      %s17 = sadd.s32 1, %s13
    $region7: #{tpu_custom_call.1} parent=1 // loop_footer_branch
      %12 = sbr.rel target = $region3
    $region8: #{tpu_custom_call.1} parent=1 // loop_exit
      _
    %2469 = vsyncpa [#allocation3], 1
    %s2470 = scalar_lea.sflag [#allocation3], 1
    %2471 = vsyncpa %s2470, 1

</llo_original>
